<compile_context>
chip_gen: v7x
topology: tpu7x:2x2x1
jax: 0.10.0
libtpu: 0.0.40
codegen_flags: <defaults>
</compile_context>

<pallas_src>
import functools

import jax
import jax.numpy as jnp
from jax.experimental import pallas as pl
from jax.experimental.pallas import tpu as pltpu

LANE = 128
SUBLANE_BF16 = 16          # bf16 packs 16 sublanes per vreg
MAX_TILE_ROWS = 2048       # keeps activation tiles a few MB at most


def _round_up(x, m):
    return ((x + m - 1) // m) * m


def _num_tensorcores():
    """Best-effort TensorCore count per device (v7x / megacore parts expose 2)."""
    try:
        kind = jax.devices()[0].device_kind.lower()
    except Exception:  # pragma: no cover - defensive
        return 1
    return 2 if any(t in kind for t in ("v7", "v4", "v5p")) else 1


def deepqn_mlp_kernel(x_ref,
                      w1_ref, w2_ref, w3_ref, w4_ref, w5_ref,
                      b_ref,
                      out_ref):
    """One batch tile of the fused 5-matmul MLP.

    Matmul inputs are bf16 (MXU-native, half the HBM bytes); accumulation, bias add and ReLU are
    f32.  Bias slab layout (lane-aligned): [b1 0:128 | b2 128:256 | b3 256:768 | b4 768:1280 |
    b5 1280:1280+n_out_pad].
    """
    n_out_pad = b_ref.shape[1] - 1280

    # features
    h = jnp.dot(x_ref[...], w1_ref[...], preferred_element_type=jnp.float32)
    h = jnp.maximum(h + b_ref[:, 0:128], 0.0).astype(jnp.bfloat16)
    h = jnp.dot(h, w2_ref[...], preferred_element_type=jnp.float32)
    h = jnp.maximum(h + b_ref[:, 128:256], 0.0).astype(jnp.bfloat16)
    h = jnp.dot(h, w3_ref[...], preferred_element_type=jnp.float32)
    h = jnp.maximum(h + b_ref[:, 256:768], 0.0).astype(jnp.bfloat16)

    # value head (dropout == 0 -> no dropout layer, matching the PyTorch branch)
    h = jnp.dot(h, w4_ref[...], preferred_element_type=jnp.float32)
    h = jnp.maximum(h + b_ref[:, 768:1280], 0.0).astype(jnp.bfloat16)
    q = jnp.dot(h, w5_ref[...], preferred_element_type=jnp.float32) \
        + b_ref[:, 1280:1280 + n_out_pad]

    out_ref[...] = q.astype(out_ref.dtype)


def prepare_params(params):
    """Run ONCE per parameter update (hoisted out of the per-step forward path).

    Casts weights to bf16, pads D_in to the bf16 sublane multiple (16), pads the output layer to
    a lane-dense width of 128, and concatenates all biases into a single f32 slab.
    Returns (prepared_dict, num_actions).
    """
    d_in = params["w1"].shape[0]
    num_actions = params["w5"].shape[1]
    d_in_pad = _round_up(d_in, SUBLANE_BF16)
    n_out_pad = _round_up(num_actions, LANE)

    w1 = jnp.zeros((d_in_pad, 128), jnp.bfloat16)
    w1 = w1.at[:d_in, :].set(params["w1"].astype(jnp.bfloat16))
    w5 = jnp.zeros((512, n_out_pad), jnp.bfloat16)
    w5 = w5.at[:, :num_actions].set(params["w5"].astype(jnp.bfloat16))
    b5 = jnp.zeros((1, n_out_pad), jnp.float32)
    b5 = b5.at[:, :num_actions].set(params["b5"].astype(jnp.float32))

    biases = jnp.concatenate(
        [params["b1"].astype(jnp.float32),   # 128
         params["b2"].astype(jnp.float32),   # 128
         params["b3"].astype(jnp.float32),   # 512
         params["b4"].astype(jnp.float32),   # 512
         b5],                                # n_out_pad
        axis=1)

    prepared = {
        "w1": w1,
        "w2": params["w2"].astype(jnp.bfloat16),
        "w3": params["w3"].astype(jnp.bfloat16),
        "w4": params["w4"].astype(jnp.bfloat16),
        "w5": w5,
        "biases": biases,
    }
    return prepared, num_actions


@functools.partial(jax.jit, static_argnames=("num_actions",))
def deepqn_forward(x, prepared, *, num_actions):
    """x: (B, D_in) float32.  Returns (B, num_actions) float32 Q-values."""
    B, d_in = x.shape
    w1, w2, w3, w4, w5 = (prepared[k] for k in ("w1", "w2", "w3", "w4", "w5"))
    biases = prepared["biases"]
    d_in_pad = w1.shape[0]
    n_out_pad = w5.shape[1]

    # One grid step per TensorCore (grid-step overhead dominates compute at these sizes).
    num_tc = _num_tensorcores()
    tile = min(_round_up(max(-(-B // num_tc), 1), SUBLANE_BF16), MAX_TILE_ROWS)
    n_steps = -(-B // tile)
    b_pad = tile * n_steps

    # Pad batch rows / D_in with zeros (padded Q rows are garbage and get sliced off below).
    if b_pad == B and d_in_pad == d_in:
        x_p = x.astype(jnp.bfloat16)
    else:
        x_p = jnp.zeros((b_pad, d_in_pad), jnp.bfloat16)
        x_p = x_p.at[:B, :d_in].set(x.astype(jnp.bfloat16))

    def const_map(i):
        return (0, 0)

    in_specs = [
        pl.BlockSpec((tile, d_in_pad), lambda i: (i, 0)),   # x: tiled over the batch grid
        pl.BlockSpec(w1.shape, const_map),                  # weights / biases: VMEM-resident
        pl.BlockSpec(w2.shape, const_map),
        pl.BlockSpec(w3.shape, const_map),
        pl.BlockSpec(w4.shape, const_map),
        pl.BlockSpec(w5.shape, const_map),
        pl.BlockSpec(biases.shape, const_map),
    ]
    out_specs = pl.BlockSpec((tile, n_out_pad), lambda i: (i, 0))

    flops = 2 * b_pad * (d_in_pad * 128 + 128 * 128 + 128 * 512
                         + 512 * 512 + 512 * n_out_pad)
    weight_bytes = 2 * (w1.size + w2.size + w3.size + w4.size + w5.size)
    bytes_accessed = int(2 * x_p.size + weight_bytes + 4 * biases.size
                         + 4 * b_pad * n_out_pad)
    cost = pl.CostEstimate(flops=int(flops), transcendentals=0,
                           bytes_accessed=bytes_accessed)

    out = pl.pallas_call(
        deepqn_mlp_kernel,
        out_shape=jax.ShapeDtypeStruct((b_pad, n_out_pad), jnp.float32),
        grid=(n_steps,),
        in_specs=in_specs,
        out_specs=out_specs,
        compiler_params=pltpu.CompilerParams(
            dimension_semantics=("parallel",),
        ),
        cost_estimate=cost,
    )(x_p, w1, w2, w3, w4, w5, biases)

    return out[:B, :num_actions]


def init_params(key, d_in, num_actions):
    """Deterministic init. PyTorch Linear weight (out,in) is stored transposed as (in,out)."""
    dims = [(d_in, 128), (128, 128), (128, 512), (512, 512), (512, num_actions)]
    params = {}
    for idx, (fan_in, fan_out) in enumerate(dims, start=1):
        key, kw, kb = jax.random.split(key, 3)
        bound = 1.0 / jnp.sqrt(jnp.float32(fan_in))  # nn.Linear default U(-1/sqrt(in), 1/sqrt(in))
        params[f"w{idx}"] = jax.random.uniform(kw, (fan_in, fan_out), jnp.float32, -bound, bound)
        params[f"b{idx}"] = jax.random.uniform(kb, (1, fan_out), jnp.float32, -bound, bound)
    return params


def reference_forward(x, params):
    """Precision-matched reference: bf16 matmul inputs, f32 accumulation, f32 bias/ReLU."""
    def dense(h, w, b, relu):
        y = jnp.dot(h.astype(jnp.bfloat16), w.astype(jnp.bfloat16),
                    preferred_element_type=jnp.float32) + b.astype(jnp.float32)
        return jnp.maximum(y, 0.0) if relu else y

    h = x.astype(jnp.float32)
    h = dense(h, params["w1"], params["b1"], True)
    h = dense(h, params["w2"], params["b2"], True)
    h = dense(h, params["w3"], params["b3"], True)
    h = dense(h, params["w4"], params["b4"], True)
    return dense(h, params["w5"], params["b5"], False)


if __name__ == "__main__":
    # Small shapes consistent with the MLP branch: input_shape=(16,), num_actions=6, batch=2.
    B, D_IN, NUM_ACTIONS = 2, 16, 6

    key = jax.random.PRNGKey(0)
    key, kx = jax.random.split(key)
    x = jax.random.normal(kx, (B, D_IN), jnp.float32)
    params = init_params(key, D_IN, NUM_ACTIONS)

    # Weight prep is hoisted: done once here, not per forward call.
    prepared, num_actions = prepare_params(params)
    prepared = jax.tree_util.tree_map(jax.block_until_ready, prepared)

    q = jax.block_until_ready(deepqn_forward(x, prepared, num_actions=num_actions))
    q_ref = reference_forward(x, params)
    assert q.shape == (B, NUM_ACTIONS)
    assert jnp.allclose(q, q_ref, atol=1e-2, rtol=1e-2)

    # Larger batch exercising multi-row tiles (and 2 grid steps / megacore on v7x-class parts).
    key, kx2 = jax.random.split(key)
    xb = jax.random.normal(kx2, (320, D_IN), jnp.float32)
    qb = jax.block_until_ready(deepqn_forward(xb, prepared, num_actions=num_actions))
    qb_ref = reference_forward(xb, params)
    assert qb.shape == (320, NUM_ACTIONS)
    assert jnp.allclose(qb, qb_ref, atol=1e-2, rtol=1e-2)

    print("KERNEL_OK")
</pallas_src>

<mosaic_0001>
module attributes {stable_mosaic.version = 11 : i64} {
  func.func @deepqn_mlp_kernel(%arg0: i32, %arg1: memref<16x16xbf16, #tpu.memory_space<vmem>>, %arg2: memref<16x128xbf16, #tpu.memory_space<vmem>>, %arg3: memref<128x128xbf16, #tpu.memory_space<vmem>>, %arg4: memref<128x512xbf16, #tpu.memory_space<vmem>>, %arg5: memref<512x512xbf16, #tpu.memory_space<vmem>>, %arg6: memref<512x128xbf16, #tpu.memory_space<vmem>>, %arg7: memref<1x1408xf32, #tpu.memory_space<vmem>>, %arg8: memref<16x128xf32, #tpu.memory_space<vmem>>) attributes {dimension_semantics = [#tpu.dimension_semantics<parallel>], iteration_bounds = array<i64: 1>, scalar_prefetch = 0 : i64, scratch_operands = 0 : i64, tpu.core_type = #tpu.core_type<tc>, window_params = [{transform_indices = @transform_0, window_bounds = array<i64: 16, 16>}, {pipeline_mode = #tpu.pipeline_mode<synchronous>, transform_indices = @transform_1, window_bounds = array<i64: 16, 128>}, {pipeline_mode = #tpu.pipeline_mode<synchronous>, transform_indices = @transform_2, window_bounds = array<i64: 128, 128>}, {pipeline_mode = #tpu.pipeline_mode<synchronous>, transform_indices = @transform_3, window_bounds = array<i64: 128, 512>}, {pipeline_mode = #tpu.pipeline_mode<synchronous>, transform_indices = @transform_4, window_bounds = array<i64: 512, 512>}, {pipeline_mode = #tpu.pipeline_mode<synchronous>, transform_indices = @transform_5, window_bounds = array<i64: 512, 128>}, {pipeline_mode = #tpu.pipeline_mode<synchronous>, transform_indices = @transform_6, window_bounds = array<i64: 1, 1408>}, {transform_indices = @transform_7, window_bounds = array<i64: 16, 128>}]} {
    %c0 = arith.constant 0 : index
    %c0_0 = arith.constant 0 : index
    %0 = vector.load %arg1[%c0, %c0_0] : memref<16x16xbf16, #tpu.memory_space<vmem>>, vector<16x16xbf16>
    %c0_1 = arith.constant 0 : index
    %c0_2 = arith.constant 0 : index
    %1 = vector.load %arg2[%c0_1, %c0_2] : memref<16x128xbf16, #tpu.memory_space<vmem>>, vector<16x128xbf16>
    %cst = arith.constant dense<0.000000e+00> : vector<16x128xf32>
    %2 = tpu.matmul %0, %1, %cst {dimension_numbers = #tpu.dot_dimension_numbers<[1], [0], [0], [1], [0, 0, 1, 1], [], []>} : vector<16x16xbf16>, vector<16x128xbf16>, vector<16x128xf32> -> vector<16x128xf32>
    %c0_3 = arith.constant 0 : index
    %c0_4 = arith.constant 0 : index
    %3 = vector.load %arg7[%c0_3, %c0_4] : memref<1x1408xf32, #tpu.memory_space<vmem>>, vector<1x128xf32>
    %4 = vector.broadcast %3 : vector<1x128xf32> to vector<16x128xf32>
    %5 = arith.addf %2, %4 : vector<16x128xf32>
    %cst_5 = arith.constant 0.000000e+00 : f32
    %6 = vector.broadcast %cst_5 : f32 to vector<16x128xf32>
    %7 = arith.maximumf %5, %6 : vector<16x128xf32>
    %8 = arith.truncf %7 : vector<16x128xf32> to vector<16x128xbf16>
    %c0_6 = arith.constant 0 : index
    %c0_7 = arith.constant 0 : index
    %9 = vector.load %arg3[%c0_6, %c0_7] : memref<128x128xbf16, #tpu.memory_space<vmem>>, vector<128x128xbf16>
    %cst_8 = arith.constant dense<0.000000e+00> : vector<16x128xf32>
    %10 = tpu.matmul %8, %9, %cst_8 {dimension_numbers = #tpu.dot_dimension_numbers<[1], [0], [0], [1], [0, 0, 1, 1], [], []>} : vector<16x128xbf16>, vector<128x128xbf16>, vector<16x128xf32> -> vector<16x128xf32>
    %c0_9 = arith.constant 0 : index
    %c128 = arith.constant 128 : index
    %11 = vector.load %arg7[%c0_9, %c128] : memref<1x1408xf32, #tpu.memory_space<vmem>>, vector<1x128xf32>
    %12 = vector.broadcast %11 : vector<1x128xf32> to vector<16x128xf32>
    %13 = arith.addf %10, %12 : vector<16x128xf32>
    %cst_10 = arith.constant 0.000000e+00 : f32
    %14 = vector.broadcast %cst_10 : f32 to vector<16x128xf32>
    %15 = arith.maximumf %13, %14 : vector<16x128xf32>
    %16 = arith.truncf %15 : vector<16x128xf32> to vector<16x128xbf16>
    %c0_11 = arith.constant 0 : index
    %c0_12 = arith.constant 0 : index
    %17 = vector.load %arg4[%c0_11, %c0_12] : memref<128x512xbf16, #tpu.memory_space<vmem>>, vector<128x512xbf16>
    %cst_13 = arith.constant dense<0.000000e+00> : vector<16x512xf32>
    %18 = tpu.matmul %16, %17, %cst_13 {dimension_numbers = #tpu.dot_dimension_numbers<[1], [0], [0], [1], [0, 0, 1, 1], [], []>} : vector<16x128xbf16>, vector<128x512xbf16>, vector<16x512xf32> -> vector<16x512xf32>
    %c0_14 = arith.constant 0 : index
    %c256 = arith.constant 256 : index
    %19 = vector.load %arg7[%c0_14, %c256] : memref<1x1408xf32, #tpu.memory_space<vmem>>, vector<1x512xf32>
    %20 = vector.broadcast %19 : vector<1x512xf32> to vector<16x512xf32>
    %21 = arith.addf %18, %20 : vector<16x512xf32>
    %cst_15 = arith.constant 0.000000e+00 : f32
    %22 = vector.broadcast %cst_15 : f32 to vector<16x512xf32>
    %23 = arith.maximumf %21, %22 : vector<16x512xf32>
    %24 = arith.truncf %23 : vector<16x512xf32> to vector<16x512xbf16>
    %c0_16 = arith.constant 0 : index
    %c0_17 = arith.constant 0 : index
    %25 = vector.load %arg5[%c0_16, %c0_17] : memref<512x512xbf16, #tpu.memory_space<vmem>>, vector<512x512xbf16>
    %cst_18 = arith.constant dense<0.000000e+00> : vector<16x512xf32>
    %26 = tpu.matmul %24, %25, %cst_18 {dimension_numbers = #tpu.dot_dimension_numbers<[1], [0], [0], [1], [0, 0, 1, 1], [], []>} : vector<16x512xbf16>, vector<512x512xbf16>, vector<16x512xf32> -> vector<16x512xf32>
    %c0_19 = arith.constant 0 : index
    %c768 = arith.constant 768 : index
    %27 = vector.load %arg7[%c0_19, %c768] : memref<1x1408xf32, #tpu.memory_space<vmem>>, vector<1x512xf32>
    %28 = vector.broadcast %27 : vector<1x512xf32> to vector<16x512xf32>
    %29 = arith.addf %26, %28 : vector<16x512xf32>
    %cst_20 = arith.constant 0.000000e+00 : f32
    %30 = vector.broadcast %cst_20 : f32 to vector<16x512xf32>
    %31 = arith.maximumf %29, %30 : vector<16x512xf32>
    %32 = arith.truncf %31 : vector<16x512xf32> to vector<16x512xbf16>
    %c0_21 = arith.constant 0 : index
    %c0_22 = arith.constant 0 : index
    %33 = vector.load %arg6[%c0_21, %c0_22] : memref<512x128xbf16, #tpu.memory_space<vmem>>, vector<512x128xbf16>
    %cst_23 = arith.constant dense<0.000000e+00> : vector<16x128xf32>
    %34 = tpu.matmul %32, %33, %cst_23 {dimension_numbers = #tpu.dot_dimension_numbers<[1], [0], [0], [1], [0, 0, 1, 1], [], []>} : vector<16x512xbf16>, vector<512x128xbf16>, vector<16x128xf32> -> vector<16x128xf32>
    %c0_24 = arith.constant 0 : index
    %c1280 = arith.constant 1280 : index
    %35 = vector.load %arg7[%c0_24, %c1280] : memref<1x1408xf32, #tpu.memory_space<vmem>>, vector<1x128xf32>
    %36 = vector.broadcast %35 : vector<1x128xf32> to vector<16x128xf32>
    %37 = arith.addf %34, %36 : vector<16x128xf32>
    %c0_25 = arith.constant 0 : index
    %c0_26 = arith.constant 0 : index
    %38 = vector.load %arg8[%c0_25, %c0_26] : memref<16x128xf32, #tpu.memory_space<vmem>>, vector<16x128xf32>
    tpu.vector_store %arg8[%c0_25, %c0_26], %37 {strides = array<i32>} : memref<16x128xf32, #tpu.memory_space<vmem>>, vector<16x128xf32>,
    return
  }
  func.func @transform_0(%arg0: i32) -> (i32, i32) {
    %c0_i32 = arith.constant 0 : i32
    %c0_i32_0 = arith.constant 0 : i32
    return %arg0, %c0_i32 : i32, i32
  }
  func.func @transform_1(%arg0: i32) -> (i32, i32) {
    %c0_i32 = arith.constant 0 : i32
    %c0_i32_0 = arith.constant 0 : i32
    %c0_i32_1 = arith.constant 0 : i32
    return %c0_i32, %c0_i32_0 : i32, i32
  }
  func.func @transform_2(%arg0: i32) -> (i32, i32) {
    %c0_i32 = arith.constant 0 : i32
    %c0_i32_0 = arith.constant 0 : i32
    %c0_i32_1 = arith.constant 0 : i32
    return %c0_i32, %c0_i32_0 : i32, i32
  }
  func.func @transform_3(%arg0: i32) -> (i32, i32) {
    %c0_i32 = arith.constant 0 : i32
    %c0_i32_0 = arith.constant 0 : i32
    %c0_i32_1 = arith.constant 0 : i32
    return %c0_i32, %c0_i32_0 : i32, i32
  }
  func.func @transform_4(%arg0: i32) -> (i32, i32) {
    %c0_i32 = arith.constant 0 : i32
    %c0_i32_0 = arith.constant 0 : i32
    %c0_i32_1 = arith.constant 0 : i32
    return %c0_i32, %c0_i32_0 : i32, i32
  }
  func.func @transform_5(%arg0: i32) -> (i32, i32) {
    %c0_i32 = arith.constant 0 : i32
    %c0_i32_0 = arith.constant 0 : i32
    %c0_i32_1 = arith.constant 0 : i32
    return %c0_i32, %c0_i32_0 : i32, i32
  }
  func.func @transform_6(%arg0: i32) -> (i32, i32) {
    %c0_i32 = arith.constant 0 : i32
    %c0_i32_0 = arith.constant 0 : i32
    %c0_i32_1 = arith.constant 0 : i32
    return %c0_i32, %c0_i32_0 : i32, i32
  }
  func.func @transform_7(%arg0: i32) -> (i32, i32) {
    %c0_i32 = arith.constant 0 : i32
    %c0_i32_0 = arith.constant 0 : i32
    return %arg0, %c0_i32 : i32, i32
  }
}

</mosaic_0001>

<llo_original>
// kernel: deepqn_forward.1
$region0: #{deepqn_forward.1}
  #allocation0 [shape = 'u32[]', space=smem, size = 0x4, offset = 0x4, fixed_abs, tag = 'smem constant byte address 0x4 - core index']
  #allocation1 [shape = 'u32[144,128]{1,0:T(1,128)}', space=vmem, size = 0x12000, scoped, tag = 'internal scratch']
  %s0 = inlined_call_operand.vmem [shape: bf16[16,16], index: 0, kind: input, shape index: {}]
  %s1 = inlined_call_operand.vmem [shape: bf16[16,128], index: 1, kind: input, shape index: {}]
  %s2 = inlined_call_operand.hbm [shape: bf16[128,128], index: 2, kind: input, shape index: {}]
  %s3 = inlined_call_operand.hbm [shape: bf16[128,512], index: 3, kind: input, shape index: {}]
  %s4 = inlined_call_operand.hbm [shape: bf16[512,512], index: 4, kind: input, shape index: {}]
  %s5 = inlined_call_operand.hbm [shape: bf16[512,128], index: 5, kind: input, shape index: {}]
  %s6 = inlined_call_operand.vmem [shape: f32[1,1408], index: 6, kind: input, shape index: {}]
  %s7 = inlined_call_operand.vmem [shape: f32[16,128], index: 7, kind: output, shape index: {}]
  %s8 = sld [smem:[#allocation0]]
  $region54: #{deepqn_forward.1} parent=0
    _
  %s10 = ssub.s32 1, %s8
  %s11 = scalar_select 0, %s10, %s8
  $region1: #{deepqn_forward.1} parent=0
    #allocation2 [shape = 'u8[32768]{0}', space=vmem, size = 0x8000, scoped, tag = 'input window, operand 2, single buffered']
    #allocation3 [shape = 's32[1]{0}', space=sflag, size = 0x4, scoped, tag = 'scoped memory for deepqn_forward.1']
    #allocation4 [shape = 'u8[131072]{0}', space=vmem, size = 0x20000, scoped, tag = 'input window, operand 3, single buffered']
    #allocation5 [shape = 's32[1]{0}', space=sflag, size = 0x4, scoped, tag = 'scoped memory for deepqn_forward.1']
    #allocation6 [shape = 'u8[524288]{0}', space=vmem, size = 0x80000, scoped, tag = 'input window, operand 4, single buffered']
    #allocation7 [shape = 'u8[131072]{0}', space=vmem, size = 0x20000, scoped, tag = 'input window, operand 5, single buffered']
    #allocation8 [shape = 's32[1]{0}', space=sflag, size = 0x4, scoped, tag = 'scoped memory for deepqn_forward.1']
    %12 = vsyncpa [#allocation3], 0
    %13 = vsyncpa [#allocation5], 0
    %14 = vsyncpa [#allocation8], 0
    // Predicated region
    $region2: #{deepqn_forward.1} parent=1 // pred_check
      _
    $region3: #{deepqn_forward.1} parent=1 // pred_check_branch
      %16 = sbr.rel (0) target = $region5
    $region4: #{deepqn_forward.1} parent=1 // pred_region
      _
    $region5: #{deepqn_forward.1} parent=1 // pred_fallthru
      _
    // Predicated region
    $region6: #{deepqn_forward.1} parent=1 // pred_check
      _
    $region7: #{deepqn_forward.1} parent=1 // pred_check_branch
      %18 = sbr.rel (0) target = $region9
    $region8: #{deepqn_forward.1} parent=1 // pred_region
      _
    $region9: #{deepqn_forward.1} parent=1 // pred_fallthru
      _
    // Predicated region
    $region10: #{deepqn_forward.1} parent=1 // pred_check
      _
    $region11: #{deepqn_forward.1} parent=1 // pred_check_branch
      %20 = sbr.rel (0) target = $region13
    $region12: #{deepqn_forward.1} parent=1 // pred_region
      %s22 = ssub.s32 1024, 1024
      %23 = vsyncadd [#allocation3], %s22
      %s24 = sshll.u32 [#allocation2], 4
      %s25 = int_to_ptr.vmem [resolvable:$true] %s24
      %30 = dma.hbm_to_vmem [thread:$0]  %s2, 1024, %s25, [#allocation3], 64, 64, 4
    $region13: #{deepqn_forward.1} parent=1 // pred_fallthru
      _
    // Predicated region
    $region14: #{deepqn_forward.1} parent=1 // pred_check
      _
    $region15: #{deepqn_forward.1} parent=1 // pred_check_branch
      %32 = sbr.rel (0) target = $region17
    $region16: #{deepqn_forward.1} parent=1 // pred_region
      %s34 = ssub.s32 4096, 4096
      %35 = vsyncadd [#allocation5], %s34
      %s36 = sshll.u32 [#allocation4], 4
      %s37 = int_to_ptr.vmem [resolvable:$true] %s36
      %42 = dma.hbm_to_vmem [thread:$0]  %s3, 4096, %s37, [#allocation5], 256, 256, 16
    $region17: #{deepqn_forward.1} parent=1 // pred_fallthru
      _
    // Predicated region
    $region18: #{deepqn_forward.1} parent=1 // pred_check
      _
    $region19: #{deepqn_forward.1} parent=1 // pred_check_branch
      %44 = sbr.rel (0) target = $region21
    $region20: #{deepqn_forward.1} parent=1 // pred_region
      %s46 = ssub.s32 16384, 16384
      %47 = vsyncadd [#allocation5], %s46
      %s48 = sshll.u32 [#allocation6], 4
      %s49 = int_to_ptr.vmem [resolvable:$true] %s48
      %54 = dma.hbm_to_vmem [thread:$0]  %s4, 16384, %s49, [#allocation5], 256, 256, 16
    $region21: #{deepqn_forward.1} parent=1 // pred_fallthru
      _
    // Predicated region
    $region22: #{deepqn_forward.1} parent=1 // pred_check
      _
    $region23: #{deepqn_forward.1} parent=1 // pred_check_branch
      %56 = sbr.rel (0) target = $region25
    $region24: #{deepqn_forward.1} parent=1 // pred_region
      %s58 = ssub.s32 4096, 4096
      %59 = vsyncadd [#allocation8], %s58
      %s60 = sshll.u32 [#allocation7], 4
      %s61 = int_to_ptr.vmem [resolvable:$true] %s60
      %66 = dma.hbm_to_vmem [thread:$0]  %s5, 4096, %s61, [#allocation8], 64, 64, 4
    $region25: #{deepqn_forward.1} parent=1 // pred_fallthru
      _
    // Predicated region
    $region26: #{deepqn_forward.1} parent=1 // pred_check
      _
    $region27: #{deepqn_forward.1} parent=1 // pred_check_branch
      %68 = sbr.rel (0) target = $region29
    $region28: #{deepqn_forward.1} parent=1 // pred_region
      _
    $region29: #{deepqn_forward.1} parent=1 // pred_fallthru
      _
    // Predicated region
    $region30: #{deepqn_forward.1} parent=1 // pred_check
      _
    $region31: #{deepqn_forward.1} parent=1 // pred_check_branch
      %70 = sbr.rel (0) target = $region33
    $region32: #{deepqn_forward.1} parent=1 // pred_region
      %71 = dma.done [#allocation3], 1024
    $region33: #{deepqn_forward.1} parent=1 // pred_fallthru
      _
    // Predicated region
    $region34: #{deepqn_forward.1} parent=1 // pred_check
      _
    $region35: #{deepqn_forward.1} parent=1 // pred_check_branch
      %73 = sbr.rel (0) target = $region37
    $region36: #{deepqn_forward.1} parent=1 // pred_region
      %74 = dma.done [#allocation5], 4096
    $region37: #{deepqn_forward.1} parent=1 // pred_fallthru
      _
    // Predicated region
    $region38: #{deepqn_forward.1} parent=1 // pred_check
      _
    $region39: #{deepqn_forward.1} parent=1 // pred_check_branch
      %76 = sbr.rel (0) target = $region41
    $region40: #{deepqn_forward.1} parent=1 // pred_region
      %77 = dma.done [#allocation5], 16384
    $region41: #{deepqn_forward.1} parent=1 // pred_fallthru
      _
    // Predicated region
    $region42: #{deepqn_forward.1} parent=1 // pred_check
      _
    $region43: #{deepqn_forward.1} parent=1 // pred_check_branch
      %79 = sbr.rel (0) target = $region45
    $region44: #{deepqn_forward.1} parent=1 // pred_region
      %80 = dma.done [#allocation8], 4096
    $region45: #{deepqn_forward.1} parent=1 // pred_fallthru
      _
    %v82 = vld [vmem:[%s0] sm:$0xf]
    %v83 = vld [vmem:[%s0 + $0x4] sm:$0xf]
    %v84 = vld [vmem:[%s1] sm:$0xf]
    %v85 = vld [vmem:[%s1 + $0x4] sm:$0xf]
    %v86 = vld [vmem:[%s6] sm:$0x1]
    %v88 = vlaneseq
    %v89 = vshrl.u32 %v88, 7
    %v90 = vsub.s32 0, %v89
    %v91 = vrot.slane %v86, %v90
    %v95 = vunpack.c.l.b16 %v82
    %v96 = vunpack.c.l.b16 %v83
    %v97 = vpack.c.b16 %v96, %v95
    %v100 = vunpack.c.l.b16 %v84
    %v101 = vunpack.c.l.b16 %v85
    %v102 = vpack.c.b16 %v101, %v100
    %vm104 = vcmask 130048
    %v106 = vsel %vm104, %v97, 0
    %108 = vmatprep.subr.bf16.mxu0 0
    %109 = vmatpush1.bf16.msra.mxu0 %v102
    %110 = vmatprep.subr.bf16.mxu0 0
    %111 = vmatpush1.bf16.msra.mxu0 0
    %112 = vmatprep.subr.bf16.mxu0 0
    %113 = vmatpush1.bf16.msra.mxu0 0
    %114 = vmatprep.subr.bf16.mxu0 0
    %115 = vmatpush1.bf16.msra.mxu0 0
    %116 = vmatprep.subr.bf16.mxu0 0
    %117 = vmatpush1.bf16.msra.mxu0 0
    %118 = vmatprep.subr.bf16.mxu0 0
    %119 = vmatpush1.bf16.msra.mxu0 0
    %120 = vmatprep.subr.bf16.mxu0 0
    %121 = vmatpush1.bf16.msra.mxu0 0
    %122 = vmatprep.subr.bf16.mxu0 0
    %123 = vmatpush1.bf16.msra.mxu0 0
    %124 = vmatprep.subr.bf16.mxu0 0
    %125 = vmatpush1.bf16.msra.mxu0 0
    %126 = vmatprep.subr.bf16.mxu0 0
    %127 = vmatpush1.bf16.msra.mxu0 0
    %128 = vmatprep.subr.bf16.mxu0 0
    %129 = vmatpush1.bf16.msra.mxu0 0
    %130 = vmatprep.subr.bf16.mxu0 0
    %131 = vmatpush1.bf16.msra.mxu0 0
    %132 = vmatprep.subr.bf16.mxu0 0
    %133 = vmatpush1.bf16.msra.mxu0 0
    %134 = vmatprep.subr.bf16.mxu0 0
    %135 = vmatpush1.bf16.msra.mxu0 0
    %136 = vmatprep.subr.bf16.mxu0 0
    %137 = vmatpush1.bf16.msra.mxu0 0
    %138 = vmatprep.subr.bf16.mxu0 0
    %139 = vmatpush1.bf16.msra.mxu0 0
    %140 = vmatprep.mubr.bf16.mxu0 0
    %141 = vmatmul.mubr.bf16.gmra.mrb[0].mxu0 %v106
    %v142 = vpop.f32.mrb[0].mxu0
    %v143 = vadd.f32 %v91, %v142
    %v144 = vpop.f32.mrb[0].mxu0
    %v145 = vpop.f32.mrb[0].mxu0
    %v146 = vadd.f32 %v91, %v145
    %v147 = vpop.f32.mrb[0].mxu0
    %148 = vdwg.mxu0
    %v149 = vmax.f32 %v143, 0.0
    %v150 = vmax.f32 %v146, 0.0
    %v151 = vpack.c.bf16 %v150, %v149
    %v152 = vld [vmem:[#allocation2] sm:$0xf]
    %v153 = vld [vmem:[#allocation2 + $0x4] sm:$0xf]
    %v154 = vld [vmem:[#allocation2 + $0x8] sm:$0xf]
    %v155 = vld [vmem:[#allocation2 + $0xc] sm:$0xf]
    %v156 = vld [vmem:[#allocation2 + $0x10] sm:$0xf]
    %v157 = vld [vmem:[#allocation2 + $0x14] sm:$0xf]
    %v158 = vld [vmem:[#allocation2 + $0x18] sm:$0xf]
    %v159 = vld [vmem:[#allocation2 + $0x1c] sm:$0xf]
    %v160 = vld [vmem:[#allocation2 + $0x20] sm:$0xf]
    %v161 = vld [vmem:[#allocation2 + $0x24] sm:$0xf]
    %v162 = vld [vmem:[#allocation2 + $0x28] sm:$0xf]
    %v163 = vld [vmem:[#allocation2 + $0x2c] sm:$0xf]
    %v164 = vld [vmem:[#allocation2 + $0x30] sm:$0xf]
    %v165 = vld [vmem:[#allocation2 + $0x34] sm:$0xf]
    %v166 = vld [vmem:[#allocation2 + $0x38] sm:$0xf]
    %v167 = vld [vmem:[#allocation2 + $0x3c] sm:$0xf]
    %v168 = vld [vmem:[%s6 + $0x1] sm:$0x1]
    %v170 = vlaneseq
    %v171 = vshrl.u32 %v170, 7
    %v172 = vsub.s32 0, %v171
    %v173 = vrot.slane %v168, %v172
    %v191 = vunpack.c.l.b16 %v152
    %v192 = vunpack.c.l.b16 %v153
    %v193 = vunpack.c.l.b16 %v154
    %v194 = vunpack.c.l.b16 %v155
    %v195 = vunpack.c.l.b16 %v156
    %v196 = vunpack.c.l.b16 %v157
    %v197 = vunpack.c.l.b16 %v158
    %v198 = vunpack.c.l.b16 %v159
    %v199 = vunpack.c.l.b16 %v160
    %v200 = vunpack.c.l.b16 %v161
    %v201 = vunpack.c.l.b16 %v162
    %v202 = vunpack.c.l.b16 %v163
    %v203 = vunpack.c.l.b16 %v164
    %v204 = vunpack.c.l.b16 %v165
    %v205 = vunpack.c.l.b16 %v166
    %v206 = vunpack.c.l.b16 %v167
    %v207 = vpack.c.b16 %v192, %v191
    %v208 = vpack.c.b16 %v194, %v193
    %v209 = vpack.c.b16 %v196, %v195
    %v210 = vpack.c.b16 %v198, %v197
    %v211 = vpack.c.b16 %v200, %v199
    %v212 = vpack.c.b16 %v202, %v201
    %v213 = vpack.c.b16 %v204, %v203
    %v214 = vpack.c.b16 %v206, %v205
    %223 = vmatprep.subr.bf16.mxu0 0
    %224 = vmatpush1.bf16.msra.mxu0 %v207
    %225 = vmatprep.subr.bf16.mxu0 0
    %226 = vmatpush1.bf16.msra.mxu0 %v208
    %227 = vmatprep.subr.bf16.mxu0 0
    %228 = vmatpush1.bf16.msra.mxu0 %v209
    %229 = vmatprep.subr.bf16.mxu0 0
    %230 = vmatpush1.bf16.msra.mxu0 %v210
    %231 = vmatprep.subr.bf16.mxu0 0
    %232 = vmatpush1.bf16.msra.mxu0 %v211
    %233 = vmatprep.subr.bf16.mxu0 0
    %234 = vmatpush1.bf16.msra.mxu0 %v212
    %235 = vmatprep.subr.bf16.mxu0 0
    %236 = vmatpush1.bf16.msra.mxu0 %v213
    %237 = vmatprep.subr.bf16.mxu0 0
    %238 = vmatpush1.bf16.msra.mxu0 %v214
    %239 = vmatprep.subr.bf16.mxu0 0
    %240 = vmatpush1.bf16.msra.mxu0 0
    %241 = vmatprep.subr.bf16.mxu0 0
    %242 = vmatpush1.bf16.msra.mxu0 0
    %243 = vmatprep.subr.bf16.mxu0 0
    %244 = vmatpush1.bf16.msra.mxu0 0
    %245 = vmatprep.subr.bf16.mxu0 0
    %246 = vmatpush1.bf16.msra.mxu0 0
    %247 = vmatprep.subr.bf16.mxu0 0
    %248 = vmatpush1.bf16.msra.mxu0 0
    %249 = vmatprep.subr.bf16.mxu0 0
    %250 = vmatpush1.bf16.msra.mxu0 0
    %251 = vmatprep.subr.bf16.mxu0 0
    %252 = vmatpush1.bf16.msra.mxu0 0
    %253 = vmatprep.subr.bf16.mxu0 0
    %254 = vmatpush1.bf16.msra.mxu0 0
    %255 = vmatprep.mubr.bf16.mxu0 0
    %256 = vmatmul.mubr.bf16.gmra.mrb[0].mxu0 %v151
    %v257 = vpop.f32.mrb[0].mxu0
    %v258 = vadd.f32 %v173, %v257
    %v259 = vpop.f32.mrb[0].mxu0
    %v260 = vpop.f32.mrb[0].mxu0
    %v261 = vadd.f32 %v173, %v260
    %v262 = vpop.f32.mrb[0].mxu0
    %263 = vdwg.mxu0
    %v264 = vmax.f32 %v258, 0.0
    %v265 = vmax.f32 %v261, 0.0
    %v266 = vpack.c.bf16 %v265, %v264
    %v267 = vld [vmem:[#allocation4] sm:$0xff]
    %v268 = vld [vmem:[#allocation4 + $0x8] sm:$0xff]
    %v269 = vld [vmem:[#allocation4 + $0x10] sm:$0xff]
    %v270 = vld [vmem:[#allocation4 + $0x18] sm:$0xff]
    %v271 = vld [vmem:[#allocation4 + $0x20] sm:$0xff]
    %v272 = vld [vmem:[#allocation4 + $0x28] sm:$0xff]
    %v273 = vld [vmem:[#allocation4 + $0x30] sm:$0xff]
    %v274 = vld [vmem:[#allocation4 + $0x38] sm:$0xff]
    %v275 = vld [vmem:[#allocation4 + $0x40] sm:$0xff]
    %v276 = vld [vmem:[#allocation4 + $0x48] sm:$0xff]
    %v277 = vld [vmem:[#allocation4 + $0x50] sm:$0xff]
    %v278 = vld [vmem:[#allocation4 + $0x58] sm:$0xff]
    %v279 = vld [vmem:[#allocation4 + $0x60] sm:$0xff]
    %v280 = vld [vmem:[#allocation4 + $0x68] sm:$0xff]
    %v281 = vld [vmem:[#allocation4 + $0x70] sm:$0xff]
    %v282 = vld [vmem:[#allocation4 + $0x78] sm:$0xff]
    %v283 = vld [vmem:[#allocation4 + $0x80] sm:$0xff]
    %v284 = vld [vmem:[#allocation4 + $0x88] sm:$0xff]
    %v285 = vld [vmem:[#allocation4 + $0x90] sm:$0xff]
    %v286 = vld [vmem:[#allocation4 + $0x98] sm:$0xff]
    %v287 = vld [vmem:[#allocation4 + $0xa0] sm:$0xff]
    %v288 = vld [vmem:[#allocation4 + $0xa8] sm:$0xff]
    %v289 = vld [vmem:[#allocation4 + $0xb0] sm:$0xff]
    %v290 = vld [vmem:[#allocation4 + $0xb8] sm:$0xff]
    %v291 = vld [vmem:[#allocation4 + $0xc0] sm:$0xff]
    %v292 = vld [vmem:[#allocation4 + $0xc8] sm:$0xff]
    %v293 = vld [vmem:[#allocation4 + $0xd0] sm:$0xff]
    %v294 = vld [vmem:[#allocation4 + $0xd8] sm:$0xff]
    %v295 = vld [vmem:[#allocation4 + $0xe0] sm:$0xff]
    %v296 = vld [vmem:[#allocation4 + $0xe8] sm:$0xff]
    %v297 = vld [vmem:[#allocation4 + $0xf0] sm:$0xff]
    %v298 = vld [vmem:[#allocation4 + $0xf8] sm:$0xff]
    %v299 = vld [vmem:[%s6 + $0x2] sm:$0xf]
    %v301 = vlaneseq
    %v302 = vshrl.u32 %v301, 7
    %v303 = vsub.s32 0, %v302
    %v304 = vrot.slane %v299, %v303
    %v305 = vlaneseq
    %v306 = vshrl.u32 %v305, 7
    %v307 = vsub.s32 1, %v306
    %v308 = vrot.slane %v299, %v307
    %v309 = vlaneseq
    %v310 = vshrl.u32 %v309, 7
    %v311 = vsub.s32 2, %v310
    %v312 = vrot.slane %v299, %v311
    %v313 = vlaneseq
    %v314 = vshrl.u32 %v313, 7
    %v315 = vsub.s32 3, %v314
    %v316 = vrot.slane %v299, %v315
    %v353 = vunpack.c.l.b16 %v267
    %v354 = vunpack.c.h.b16 %v267
    %v355 = vunpack.c.l.b16 %v268
    %v356 = vunpack.c.h.b16 %v268
    %v357 = vunpack.c.l.b16 %v269
    %v358 = vunpack.c.h.b16 %v269
    %v359 = vunpack.c.l.b16 %v270
    %v360 = vunpack.c.h.b16 %v270
    %v361 = vunpack.c.l.b16 %v271
    %v362 = vunpack.c.h.b16 %v271
    %v363 = vunpack.c.l.b16 %v272
    %v364 = vunpack.c.h.b16 %v272
    %v365 = vunpack.c.l.b16 %v273
    %v366 = vunpack.c.h.b16 %v273
    %v367 = vunpack.c.l.b16 %v274
    %v368 = vunpack.c.h.b16 %v274
    %v369 = vunpack.c.l.b16 %v275
    %v370 = vunpack.c.h.b16 %v275
    %v371 = vunpack.c.l.b16 %v276
    %v372 = vunpack.c.h.b16 %v276
    %v373 = vunpack.c.l.b16 %v277
    %v374 = vunpack.c.h.b16 %v277
    %v375 = vunpack.c.l.b16 %v278
    %v376 = vunpack.c.h.b16 %v278
    %v377 = vunpack.c.l.b16 %v279
    %v378 = vunpack.c.h.b16 %v279
    %v379 = vunpack.c.l.b16 %v280
    %v380 = vunpack.c.h.b16 %v280
    %v381 = vunpack.c.l.b16 %v281
    %v382 = vunpack.c.h.b16 %v281
    %v383 = vunpack.c.l.b16 %v282
    %v384 = vunpack.c.h.b16 %v282
    %v385 = vunpack.c.l.b16 %v283
    %v386 = vunpack.c.h.b16 %v283
    %v387 = vunpack.c.l.b16 %v284
    %v388 = vunpack.c.h.b16 %v284
    %v389 = vunpack.c.l.b16 %v285
    %v390 = vunpack.c.h.b16 %v285
    %v391 = vunpack.c.l.b16 %v286
    %v392 = vunpack.c.h.b16 %v286
    %v393 = vunpack.c.l.b16 %v287
    %v394 = vunpack.c.h.b16 %v287
    %v395 = vunpack.c.l.b16 %v288
    %v396 = vunpack.c.h.b16 %v288
    %v397 = vunpack.c.l.b16 %v289
    %v398 = vunpack.c.h.b16 %v289
    %v399 = vunpack.c.l.b16 %v290
    %v400 = vunpack.c.h.b16 %v290
    %v401 = vunpack.c.l.b16 %v291
    %v402 = vunpack.c.h.b16 %v291
    %v403 = vunpack.c.l.b16 %v292
    %v404 = vunpack.c.h.b16 %v292
    %v405 = vunpack.c.l.b16 %v293
    %v406 = vunpack.c.h.b16 %v293
    %v407 = vunpack.c.l.b16 %v294
    %v408 = vunpack.c.h.b16 %v294
    %v409 = vunpack.c.l.b16 %v295
    %v410 = vunpack.c.h.b16 %v295
    %v411 = vunpack.c.l.b16 %v296
    %v412 = vunpack.c.h.b16 %v296
    %v413 = vunpack.c.l.b16 %v297
    %v414 = vunpack.c.h.b16 %v297
    %v415 = vunpack.c.l.b16 %v298
    %v416 = vunpack.c.h.b16 %v298
    %v417 = vpack.c.b16 %v357, %v353
    %v418 = vpack.c.b16 %v358, %v354
    %v419 = vpack.c.b16 %v359, %v355
    %v420 = vpack.c.b16 %v360, %v356
    %v421 = vpack.c.b16 %v365, %v361
    %v422 = vpack.c.b16 %v366, %v362
    %v423 = vpack.c.b16 %v367, %v363
    %v424 = vpack.c.b16 %v368, %v364
    %v425 = vpack.c.b16 %v373, %v369
    %v426 = vpack.c.b16 %v374, %v370
    %v427 = vpack.c.b16 %v375, %v371
    %v428 = vpack.c.b16 %v376, %v372
    %v429 = vpack.c.b16 %v381, %v377
    %v430 = vpack.c.b16 %v382, %v378
    %v431 = vpack.c.b16 %v383, %v379
    %v432 = vpack.c.b16 %v384, %v380
    %v433 = vpack.c.b16 %v389, %v385
    %v434 = vpack.c.b16 %v390, %v386
    %v435 = vpack.c.b16 %v391, %v387
    %v436 = vpack.c.b16 %v392, %v388
    %v437 = vpack.c.b16 %v397, %v393
    %v438 = vpack.c.b16 %v398, %v394
    %v439 = vpack.c.b16 %v399, %v395
    %v440 = vpack.c.b16 %v400, %v396
    %v441 = vpack.c.b16 %v405, %v401
    %v442 = vpack.c.b16 %v406, %v402
    %v443 = vpack.c.b16 %v407, %v403
    %v444 = vpack.c.b16 %v408, %v404
    %v445 = vpack.c.b16 %v413, %v409
    %v446 = vpack.c.b16 %v414, %v410
    %v447 = vpack.c.b16 %v415, %v411
    %v448 = vpack.c.b16 %v416, %v412
    %481 = vmatprep.subr.bf16.mxu0 %v418
    %482 = vmatpush1.bf16.msra.mxu0 %v417
    %483 = vmatprep.subr.bf16.mxu0 %v422
    %484 = vmatpush1.bf16.msra.mxu0 %v421
    %485 = vmatprep.subr.bf16.mxu0 %v426
    %486 = vmatpush1.bf16.msra.mxu0 %v425
    %487 = vmatprep.subr.bf16.mxu0 %v430
    %488 = vmatpush1.bf16.msra.mxu0 %v429
    %489 = vmatprep.subr.bf16.mxu0 %v434
    %490 = vmatpush1.bf16.msra.mxu0 %v433
    %491 = vmatprep.subr.bf16.mxu0 %v438
    %492 = vmatpush1.bf16.msra.mxu0 %v437
    %493 = vmatprep.subr.bf16.mxu0 %v442
    %494 = vmatpush1.bf16.msra.mxu0 %v441
    %495 = vmatprep.subr.bf16.mxu0 %v446
    %496 = vmatpush1.bf16.msra.mxu0 %v445
    %497 = vmatprep.subr.bf16.mxu0 0
    %498 = vmatpush1.bf16.msra.mxu0 0
    %499 = vmatprep.subr.bf16.mxu0 0
    %500 = vmatpush1.bf16.msra.mxu0 0
    %501 = vmatprep.subr.bf16.mxu0 0
    %502 = vmatpush1.bf16.msra.mxu0 0
    %503 = vmatprep.subr.bf16.mxu0 0
    %504 = vmatpush1.bf16.msra.mxu0 0
    %505 = vmatprep.subr.bf16.mxu0 0
    %506 = vmatpush1.bf16.msra.mxu0 0
    %507 = vmatprep.subr.bf16.mxu0 0
    %508 = vmatpush1.bf16.msra.mxu0 0
    %509 = vmatprep.subr.bf16.mxu0 0
    %510 = vmatpush1.bf16.msra.mxu0 0
    %511 = vmatprep.subr.bf16.mxu0 0
    %512 = vmatpush1.bf16.msra.mxu0 0
    %513 = vmatprep.mubr.bf16.mxu0 0
    %514 = vmatmul.mubr.bf16.gmra.mrb[0].mxu0 %v266
    %v515 = vpop.f32.mrb[0].mxu0
    %v516 = vadd.f32 %v304, %v515
    %v517 = vpop.f32.mrb[0].mxu0
    %v518 = vadd.f32 %v308, %v517
    %v519 = vpop.f32.mrb[0].mxu0
    %v520 = vadd.f32 %v304, %v519
    %v521 = vpop.f32.mrb[0].mxu0
    %v522 = vadd.f32 %v308, %v521
    %523 = vdwg.mxu0
    %524 = vmatprep.subr.bf16.mxu0 %v420
    %525 = vmatpush1.bf16.msra.mxu0 %v419
    %526 = vmatprep.subr.bf16.mxu0 %v424
    %527 = vmatpush1.bf16.msra.mxu0 %v423
    %528 = vmatprep.subr.bf16.mxu0 %v428
    %529 = vmatpush1.bf16.msra.mxu0 %v427
    %530 = vmatprep.subr.bf16.mxu0 %v432
    %531 = vmatpush1.bf16.msra.mxu0 %v431
    %532 = vmatprep.subr.bf16.mxu0 %v436
    %533 = vmatpush1.bf16.msra.mxu0 %v435
    %534 = vmatprep.subr.bf16.mxu0 %v440
    %535 = vmatpush1.bf16.msra.mxu0 %v439
    %536 = vmatprep.subr.bf16.mxu0 %v444
    %537 = vmatpush1.bf16.msra.mxu0 %v443
    %538 = vmatprep.subr.bf16.mxu0 %v448
    %539 = vmatpush1.bf16.msra.mxu0 %v447
    %540 = vmatprep.subr.bf16.mxu0 0
    %541 = vmatpush1.bf16.msra.mxu0 0
    %542 = vmatprep.subr.bf16.mxu0 0
    %543 = vmatpush1.bf16.msra.mxu0 0
    %544 = vmatprep.subr.bf16.mxu0 0
    %545 = vmatpush1.bf16.msra.mxu0 0
    %546 = vmatprep.subr.bf16.mxu0 0
    %547 = vmatpush1.bf16.msra.mxu0 0
    %548 = vmatprep.subr.bf16.mxu0 0
    %549 = vmatpush1.bf16.msra.mxu0 0
    %550 = vmatprep.subr.bf16.mxu0 0
    %551 = vmatpush1.bf16.msra.mxu0 0
    %552 = vmatprep.subr.bf16.mxu0 0
    %553 = vmatpush1.bf16.msra.mxu0 0
    %554 = vmatprep.subr.bf16.mxu0 0
    %555 = vmatpush1.bf16.msra.mxu0 0
    %556 = vmatprep.mubr.bf16.mxu0 0
    %557 = vmatmul.mubr.bf16.gmra.mrb[0].mxu0 %v266
    %v558 = vpop.f32.mrb[0].mxu0
    %v559 = vadd.f32 %v312, %v558
    %v560 = vpop.f32.mrb[0].mxu0
    %v561 = vadd.f32 %v316, %v560
    %v562 = vpop.f32.mrb[0].mxu0
    %v563 = vadd.f32 %v312, %v562
    %v564 = vpop.f32.mrb[0].mxu0
    %v565 = vadd.f32 %v316, %v564
    %566 = vdwg.mxu0
    %v567 = vmax.f32 %v516, 0.0
    %v568 = vmax.f32 %v518, 0.0
    %v569 = vmax.f32 %v559, 0.0
    %v570 = vmax.f32 %v561, 0.0
    %v571 = vmax.f32 %v520, 0.0
    %v572 = vmax.f32 %v522, 0.0
    %v573 = vmax.f32 %v563, 0.0
    %v574 = vmax.f32 %v565, 0.0
    %v575 = vpack.c.bf16 %v571, %v567
    %v576 = vpack.c.bf16 %v572, %v568
    %v577 = vpack.c.bf16 %v573, %v569
    %v578 = vpack.c.bf16 %v574, %v570
    %v579 = vld [vmem:[#allocation6] sm:$0xff]
    %v580 = vld [vmem:[#allocation6 + $0x8] sm:$0xff]
    %v581 = vld [vmem:[#allocation6 + $0x10] sm:$0xff]
    %v582 = vld [vmem:[#allocation6 + $0x18] sm:$0xff]
    %v583 = vld [vmem:[#allocation6 + $0x20] sm:$0xff]
    %v584 = vld [vmem:[#allocation6 + $0x28] sm:$0xff]
    %v585 = vld [vmem:[#allocation6 + $0x30] sm:$0xff]
    %v586 = vld [vmem:[#allocation6 + $0x38] sm:$0xff]
    %v587 = vld [vmem:[#allocation6 + $0x40] sm:$0xff]
    %v588 = vld [vmem:[#allocation6 + $0x48] sm:$0xff]
    %v589 = vld [vmem:[#allocation6 + $0x50] sm:$0xff]
    %v590 = vld [vmem:[#allocation6 + $0x58] sm:$0xff]
    %v591 = vld [vmem:[#allocation6 + $0x60] sm:$0xff]
    %v592 = vld [vmem:[#allocation6 + $0x68] sm:$0xff]
    %v593 = vld [vmem:[#allocation6 + $0x70] sm:$0xff]
    %v594 = vld [vmem:[#allocation6 + $0x78] sm:$0xff]
    %v595 = vld [vmem:[#allocation6 + $0x80] sm:$0xff]
    %v596 = vld [vmem:[#allocation6 + $0x88] sm:$0xff]
    %v597 = vld [vmem:[#allocation6 + $0x90] sm:$0xff]
    %v598 = vld [vmem:[#allocation6 + $0x98] sm:$0xff]
    %v599 = vld [vmem:[#allocation6 + $0xa0] sm:$0xff]
    %v600 = vld [vmem:[#allocation6 + $0xa8] sm:$0xff]
    %v601 = vld [vmem:[#allocation6 + $0xb0] sm:$0xff]
    %v602 = vld [vmem:[#allocation6 + $0xb8] sm:$0xff]
    %v603 = vld [vmem:[#allocation6 + $0xc0] sm:$0xff]
    %v604 = vld [vmem:[#allocation6 + $0xc8] sm:$0xff]
    %v605 = vld [vmem:[#allocation6 + $0xd0] sm:$0xff]
    %v606 = vld [vmem:[#allocation6 + $0xd8] sm:$0xff]
    %v607 = vld [vmem:[#allocation6 + $0xe0] sm:$0xff]
    %v608 = vld [vmem:[#allocation6 + $0xe8] sm:$0xff]
    %v609 = vld [vmem:[#allocation6 + $0xf0] sm:$0xff]
    %v610 = vld [vmem:[#allocation6 + $0xf8] sm:$0xff]
    %v611 = vld [vmem:[#allocation6 + $0x100] sm:$0xff]
    %v612 = vld [vmem:[#allocation6 + $0x108] sm:$0xff]
    %v613 = vld [vmem:[#allocation6 + $0x110] sm:$0xff]
    %v614 = vld [vmem:[#allocation6 + $0x118] sm:$0xff]
    %v615 = vld [vmem:[#allocation6 + $0x120] sm:$0xff]
    %v616 = vld [vmem:[#allocation6 + $0x128] sm:$0xff]
    %v617 = vld [vmem:[#allocation6 + $0x130] sm:$0xff]
    %v618 = vld [vmem:[#allocation6 + $0x138] sm:$0xff]
    %v619 = vld [vmem:[#allocation6 + $0x140] sm:$0xff]
    %v620 = vld [vmem:[#allocation6 + $0x148] sm:$0xff]
    %v621 = vld [vmem:[#allocation6 + $0x150] sm:$0xff]
    %v622 = vld [vmem:[#allocation6 + $0x158] sm:$0xff]
    %v623 = vld [vmem:[#allocation6 + $0x160] sm:$0xff]
    %v624 = vld [vmem:[#allocation6 + $0x168] sm:$0xff]
    %v625 = vld [vmem:[#allocation6 + $0x170] sm:$0xff]
    %v626 = vld [vmem:[#allocation6 + $0x178] sm:$0xff]
    %v627 = vld [vmem:[#allocation6 + $0x180] sm:$0xff]
    %v628 = vld [vmem:[#allocation6 + $0x188] sm:$0xff]
    %v629 = vld [vmem:[#allocation6 + $0x190] sm:$0xff]
    %v630 = vld [vmem:[#allocation6 + $0x198] sm:$0xff]
    %v631 = vld [vmem:[#allocation6 + $0x1a0] sm:$0xff]
    %v632 = vld [vmem:[#allocation6 + $0x1a8] sm:$0xff]
    %v633 = vld [vmem:[#allocation6 + $0x1b0] sm:$0xff]
    %v634 = vld [vmem:[#allocation6 + $0x1b8] sm:$0xff]
    %v635 = vld [vmem:[#allocation6 + $0x1c0] sm:$0xff]
    %v636 = vld [vmem:[#allocation6 + $0x1c8] sm:$0xff]
    %v637 = vld [vmem:[#allocation6 + $0x1d0] sm:$0xff]
    %v638 = vld [vmem:[#allocation6 + $0x1d8] sm:$0xff]
    %v639 = vld [vmem:[#allocation6 + $0x1e0] sm:$0xff]
    %v640 = vld [vmem:[#allocation6 + $0x1e8] sm:$0xff]
    %v641 = vld [vmem:[#allocation6 + $0x1f0] sm:$0xff]
    %v642 = vld [vmem:[#allocation6 + $0x1f8] sm:$0xff]
    %v643 = vld [vmem:[#allocation6 + $0x200] sm:$0xff]
    %v644 = vld [vmem:[#allocation6 + $0x208] sm:$0xff]
    %v645 = vld [vmem:[#allocation6 + $0x210] sm:$0xff]
    %v646 = vld [vmem:[#allocation6 + $0x218] sm:$0xff]
    %v647 = vld [vmem:[#allocation6 + $0x220] sm:$0xff]
    %v648 = vld [vmem:[#allocation6 + $0x228] sm:$0xff]
    %v649 = vld [vmem:[#allocation6 + $0x230] sm:$0xff]
    %v650 = vld [vmem:[#allocation6 + $0x238] sm:$0xff]
    %v651 = vld [vmem:[#allocation6 + $0x240] sm:$0xff]
    %v652 = vld [vmem:[#allocation6 + $0x248] sm:$0xff]
    %v653 = vld [vmem:[#allocation6 + $0x250] sm:$0xff]
    %v654 = vld [vmem:[#allocation6 + $0x258] sm:$0xff]
    %v655 = vld [vmem:[#allocation6 + $0x260] sm:$0xff]
    %v656 = vld [vmem:[#allocation6 + $0x268] sm:$0xff]
    %v657 = vld [vmem:[#allocation6 + $0x270] sm:$0xff]
    %v658 = vld [vmem:[#allocation6 + $0x278] sm:$0xff]
    %v659 = vld [vmem:[#allocation6 + $0x280] sm:$0xff]
    %v660 = vld [vmem:[#allocation6 + $0x288] sm:$0xff]
    %v661 = vld [vmem:[#allocation6 + $0x290] sm:$0xff]
    %v662 = vld [vmem:[#allocation6 + $0x298] sm:$0xff]
    %v663 = vld [vmem:[#allocation6 + $0x2a0] sm:$0xff]
    %v664 = vld [vmem:[#allocation6 + $0x2a8] sm:$0xff]
    %v665 = vld [vmem:[#allocation6 + $0x2b0] sm:$0xff]
    %v666 = vld [vmem:[#allocation6 + $0x2b8] sm:$0xff]
    %v667 = vld [vmem:[#allocation6 + $0x2c0] sm:$0xff]
    %v668 = vld [vmem:[#allocation6 + $0x2c8] sm:$0xff]
    %v669 = vld [vmem:[#allocation6 + $0x2d0] sm:$0xff]
    %v670 = vld [vmem:[#allocation6 + $0x2d8] sm:$0xff]
    %v671 = vld [vmem:[#allocation6 + $0x2e0] sm:$0xff]
    %v672 = vld [vmem:[#allocation6 + $0x2e8] sm:$0xff]
    %v673 = vld [vmem:[#allocation6 + $0x2f0] sm:$0xff]
    %v674 = vld [vmem:[#allocation6 + $0x2f8] sm:$0xff]
    %v675 = vld [vmem:[#allocation6 + $0x300] sm:$0xff]
    %v676 = vld [vmem:[#allocation6 + $0x308] sm:$0xff]
    %v677 = vld [vmem:[#allocation6 + $0x310] sm:$0xff]
    %v678 = vld [vmem:[#allocation6 + $0x318] sm:$0xff]
    %v679 = vld [vmem:[#allocation6 + $0x320] sm:$0xff]
    %v680 = vld [vmem:[#allocation6 + $0x328] sm:$0xff]
    %v681 = vld [vmem:[#allocation6 + $0x330] sm:$0xff]
    %v682 = vld [vmem:[#allocation6 + $0x338] sm:$0xff]
    %v683 = vld [vmem:[#allocation6 + $0x340] sm:$0xff]
    %v684 = vld [vmem:[#allocation6 + $0x348] sm:$0xff]
    %v685 = vld [vmem:[#allocation6 + $0x350] sm:$0xff]
    %v686 = vld [vmem:[#allocation6 + $0x358] sm:$0xff]
    %v687 = vld [vmem:[#allocation6 + $0x360] sm:$0xff]
    %v688 = vld [vmem:[#allocation6 + $0x368] sm:$0xff]
    %v689 = vld [vmem:[#allocation6 + $0x370] sm:$0xff]
    %v690 = vld [vmem:[#allocation6 + $0x378] sm:$0xff]
    %v691 = vld [vmem:[#allocation6 + $0x380] sm:$0xff]
    %v692 = vld [vmem:[#allocation6 + $0x388] sm:$0xff]
    %v693 = vld [vmem:[#allocation6 + $0x390] sm:$0xff]
    %v694 = vld [vmem:[#allocation6 + $0x398] sm:$0xff]
    %v695 = vld [vmem:[#allocation6 + $0x3a0] sm:$0xff]
    %v696 = vld [vmem:[#allocation6 + $0x3a8] sm:$0xff]
    %v697 = vld [vmem:[#allocation6 + $0x3b0] sm:$0xff]
    %v698 = vld [vmem:[#allocation6 + $0x3b8] sm:$0xff]
    %v699 = vld [vmem:[#allocation6 + $0x3c0] sm:$0xff]
    %v700 = vld [vmem:[#allocation6 + $0x3c8] sm:$0xff]
    %v701 = vld [vmem:[#allocation6 + $0x3d0] sm:$0xff]
    %v702 = vld [vmem:[#allocation6 + $0x3d8] sm:$0xff]
    %v703 = vld [vmem:[#allocation6 + $0x3e0] sm:$0xff]
    %v704 = vld [vmem:[#allocation6 + $0x3e8] sm:$0xff]
    %v705 = vld [vmem:[#allocation6 + $0x3f0] sm:$0xff]
    %v706 = vld [vmem:[#allocation6 + $0x3f8] sm:$0xff]
    %v707 = vld [vmem:[%s6 + $0x6] sm:$0xf]
    %v709 = vlaneseq
    %v710 = vshrl.u32 %v709, 7
    %v711 = vsub.s32 0, %v710
    %v712 = vrot.slane %v707, %v711
    %v713 = vlaneseq
    %v714 = vshrl.u32 %v713, 7
    %v715 = vsub.s32 1, %v714
    %v716 = vrot.slane %v707, %v715
    %v717 = vlaneseq
    %v718 = vshrl.u32 %v717, 7
    %v719 = vsub.s32 2, %v718
    %v720 = vrot.slane %v707, %v719
    %v721 = vlaneseq
    %v722 = vshrl.u32 %v721, 7
    %v723 = vsub.s32 3, %v722
    %v724 = vrot.slane %v707, %v723
    %v857 = vunpack.c.l.b16 %v579
    %v858 = vunpack.c.h.b16 %v579
    %v859 = vunpack.c.l.b16 %v580
    %v860 = vunpack.c.h.b16 %v580
    %v861 = vunpack.c.l.b16 %v581
    %v862 = vunpack.c.h.b16 %v581
    %v863 = vunpack.c.l.b16 %v582
    %v864 = vunpack.c.h.b16 %v582
    %v865 = vunpack.c.l.b16 %v583
    %v866 = vunpack.c.h.b16 %v583
    %v867 = vunpack.c.l.b16 %v584
    %v868 = vunpack.c.h.b16 %v584
    %v869 = vunpack.c.l.b16 %v585
    %v870 = vunpack.c.h.b16 %v585
    %v871 = vunpack.c.l.b16 %v586
    %v872 = vunpack.c.h.b16 %v586
    %v873 = vunpack.c.l.b16 %v587
    %v874 = vunpack.c.h.b16 %v587
    %v875 = vunpack.c.l.b16 %v588
    %v876 = vunpack.c.h.b16 %v588
    %v877 = vunpack.c.l.b16 %v589
    %v878 = vunpack.c.h.b16 %v589
    %v879 = vunpack.c.l.b16 %v590
    %v880 = vunpack.c.h.b16 %v590
    %v881 = vunpack.c.l.b16 %v591
    %v882 = vunpack.c.h.b16 %v591
    %v883 = vunpack.c.l.b16 %v592
    %v884 = vunpack.c.h.b16 %v592
    %v885 = vunpack.c.l.b16 %v593
    %v886 = vunpack.c.h.b16 %v593
    %v887 = vunpack.c.l.b16 %v594
    %v888 = vunpack.c.h.b16 %v594
    %v889 = vunpack.c.l.b16 %v595
    %v890 = vunpack.c.h.b16 %v595
    %v891 = vunpack.c.l.b16 %v596
    %v892 = vunpack.c.h.b16 %v596
    %v893 = vunpack.c.l.b16 %v597
    %v894 = vunpack.c.h.b16 %v597
    %v895 = vunpack.c.l.b16 %v598
    %v896 = vunpack.c.h.b16 %v598
    %v897 = vunpack.c.l.b16 %v599
    %v898 = vunpack.c.h.b16 %v599
    %v899 = vunpack.c.l.b16 %v600
    %v900 = vunpack.c.h.b16 %v600
    %v901 = vunpack.c.l.b16 %v601
    %v902 = vunpack.c.h.b16 %v601
    %v903 = vunpack.c.l.b16 %v602
    %v904 = vunpack.c.h.b16 %v602
    %v905 = vunpack.c.l.b16 %v603
    %v906 = vunpack.c.h.b16 %v603
    %v907 = vunpack.c.l.b16 %v604
    %v908 = vunpack.c.h.b16 %v604
    %v909 = vunpack.c.l.b16 %v605
    %v910 = vunpack.c.h.b16 %v605
    %v911 = vunpack.c.l.b16 %v606
    %v912 = vunpack.c.h.b16 %v606
    %v913 = vunpack.c.l.b16 %v607
    %v914 = vunpack.c.h.b16 %v607
    %v915 = vunpack.c.l.b16 %v608
    %v916 = vunpack.c.h.b16 %v608
    %v917 = vunpack.c.l.b16 %v609
    %v918 = vunpack.c.h.b16 %v609
    %v919 = vunpack.c.l.b16 %v610
    %v920 = vunpack.c.h.b16 %v610
    %v921 = vunpack.c.l.b16 %v611
    %v922 = vunpack.c.h.b16 %v611
    %v923 = vunpack.c.l.b16 %v612
    %v924 = vunpack.c.h.b16 %v612
    %v925 = vunpack.c.l.b16 %v613
    %v926 = vunpack.c.h.b16 %v613
    %v927 = vunpack.c.l.b16 %v614
    %v928 = vunpack.c.h.b16 %v614
    %v929 = vunpack.c.l.b16 %v615
    %v930 = vunpack.c.h.b16 %v615
    %v931 = vunpack.c.l.b16 %v616
    %v932 = vunpack.c.h.b16 %v616
    %v933 = vunpack.c.l.b16 %v617
    %v934 = vunpack.c.h.b16 %v617
    %v935 = vunpack.c.l.b16 %v618
    %v936 = vunpack.c.h.b16 %v618
    %v937 = vunpack.c.l.b16 %v619
    %v938 = vunpack.c.h.b16 %v619
    %v939 = vunpack.c.l.b16 %v620
    %v940 = vunpack.c.h.b16 %v620
    %v941 = vunpack.c.l.b16 %v621
    %v942 = vunpack.c.h.b16 %v621
    %v943 = vunpack.c.l.b16 %v622
    %v944 = vunpack.c.h.b16 %v622
    %v945 = vunpack.c.l.b16 %v623
    %v946 = vunpack.c.h.b16 %v623
    %v947 = vunpack.c.l.b16 %v624
    %v948 = vunpack.c.h.b16 %v624
    %v949 = vunpack.c.l.b16 %v625
    %v950 = vunpack.c.h.b16 %v625
    %v951 = vunpack.c.l.b16 %v626
    %v952 = vunpack.c.h.b16 %v626
    %v953 = vunpack.c.l.b16 %v627
    %v954 = vunpack.c.h.b16 %v627
    %v955 = vunpack.c.l.b16 %v628
    %v956 = vunpack.c.h.b16 %v628
    %v957 = vunpack.c.l.b16 %v629
    %v958 = vunpack.c.h.b16 %v629
    %v959 = vunpack.c.l.b16 %v630
    %v960 = vunpack.c.h.b16 %v630
    %v961 = vunpack.c.l.b16 %v631
    %v962 = vunpack.c.h.b16 %v631
    %v963 = vunpack.c.l.b16 %v632
    %v964 = vunpack.c.h.b16 %v632
    %v965 = vunpack.c.l.b16 %v633
    %v966 = vunpack.c.h.b16 %v633
    %v967 = vunpack.c.l.b16 %v634
    %v968 = vunpack.c.h.b16 %v634
    %v969 = vunpack.c.l.b16 %v635
    %v970 = vunpack.c.h.b16 %v635
    %v971 = vunpack.c.l.b16 %v636
    %v972 = vunpack.c.h.b16 %v636
    %v973 = vunpack.c.l.b16 %v637
    %v974 = vunpack.c.h.b16 %v637
    %v975 = vunpack.c.l.b16 %v638
    %v976 = vunpack.c.h.b16 %v638
    %v977 = vunpack.c.l.b16 %v639
    %v978 = vunpack.c.h.b16 %v639
    %v979 = vunpack.c.l.b16 %v640
    %v980 = vunpack.c.h.b16 %v640
    %v981 = vunpack.c.l.b16 %v641
    %v982 = vunpack.c.h.b16 %v641
    %v983 = vunpack.c.l.b16 %v642
    %v984 = vunpack.c.h.b16 %v642
    %v985 = vunpack.c.l.b16 %v643
    %v986 = vunpack.c.h.b16 %v643
    %v987 = vunpack.c.l.b16 %v644
    %v988 = vunpack.c.h.b16 %v644
    %v989 = vunpack.c.l.b16 %v645
    %v990 = vunpack.c.h.b16 %v645
    %v991 = vunpack.c.l.b16 %v646
    %v992 = vunpack.c.h.b16 %v646
    %v993 = vunpack.c.l.b16 %v647
    %v994 = vunpack.c.h.b16 %v647
    %v995 = vunpack.c.l.b16 %v648
    %v996 = vunpack.c.h.b16 %v648
    %v997 = vunpack.c.l.b16 %v649
    %v998 = vunpack.c.h.b16 %v649
    %v999 = vunpack.c.l.b16 %v650
    %v1000 = vunpack.c.h.b16 %v650
    %v1001 = vunpack.c.l.b16 %v651
    %v1002 = vunpack.c.h.b16 %v651
    %v1003 = vunpack.c.l.b16 %v652
    %v1004 = vunpack.c.h.b16 %v652
    %v1005 = vunpack.c.l.b16 %v653
    %v1006 = vunpack.c.h.b16 %v653
    %v1007 = vunpack.c.l.b16 %v654
    %v1008 = vunpack.c.h.b16 %v654
    %v1009 = vunpack.c.l.b16 %v655
    %v1010 = vunpack.c.h.b16 %v655
    %v1011 = vunpack.c.l.b16 %v656
    %v1012 = vunpack.c.h.b16 %v656
    %v1013 = vunpack.c.l.b16 %v657
    %v1014 = vunpack.c.h.b16 %v657
    %v1015 = vunpack.c.l.b16 %v658
    %v1016 = vunpack.c.h.b16 %v658
    %v1017 = vunpack.c.l.b16 %v659
    %v1018 = vunpack.c.h.b16 %v659
    %v1019 = vunpack.c.l.b16 %v660
    %v1020 = vunpack.c.h.b16 %v660
    %v1021 = vunpack.c.l.b16 %v661
    %v1022 = vunpack.c.h.b16 %v661
    %v1023 = vunpack.c.l.b16 %v662
    %v1024 = vunpack.c.h.b16 %v662
    %v1025 = vunpack.c.l.b16 %v663
    %v1026 = vunpack.c.h.b16 %v663
    %v1027 = vunpack.c.l.b16 %v664
    %v1028 = vunpack.c.h.b16 %v664
    %v1029 = vunpack.c.l.b16 %v665
    %v1030 = vunpack.c.h.b16 %v665
    %v1031 = vunpack.c.l.b16 %v666
    %v1032 = vunpack.c.h.b16 %v666
    %v1033 = vunpack.c.l.b16 %v667
    %v1034 = vunpack.c.h.b16 %v667
    %v1035 = vunpack.c.l.b16 %v668
    %v1036 = vunpack.c.h.b16 %v668
    %v1037 = vunpack.c.l.b16 %v669
    %v1038 = vunpack.c.h.b16 %v669
    %v1039 = vunpack.c.l.b16 %v670
    %v1040 = vunpack.c.h.b16 %v670
    %v1041 = vunpack.c.l.b16 %v671
    %v1042 = vunpack.c.h.b16 %v671
    %v1043 = vunpack.c.l.b16 %v672
    %v1044 = vunpack.c.h.b16 %v672
    %v1045 = vunpack.c.l.b16 %v673
    %v1046 = vunpack.c.h.b16 %v673
    %v1047 = vunpack.c.l.b16 %v674
    %v1048 = vunpack.c.h.b16 %v674
    %v1049 = vunpack.c.l.b16 %v675
    %v1050 = vunpack.c.h.b16 %v675
    %v1051 = vunpack.c.l.b16 %v676
    %v1052 = vunpack.c.h.b16 %v676
    %v1053 = vunpack.c.l.b16 %v677
    %v1054 = vunpack.c.h.b16 %v677
    %v1055 = vunpack.c.l.b16 %v678
    %v1056 = vunpack.c.h.b16 %v678
    %v1057 = vunpack.c.l.b16 %v679
    %v1058 = vunpack.c.h.b16 %v679
    %v1059 = vunpack.c.l.b16 %v680
    %v1060 = vunpack.c.h.b16 %v680
    %v1061 = vunpack.c.l.b16 %v681
    %v1062 = vunpack.c.h.b16 %v681
    %v1063 = vunpack.c.l.b16 %v682
    %v1064 = vunpack.c.h.b16 %v682
    %v1065 = vunpack.c.l.b16 %v683
    %v1066 = vunpack.c.h.b16 %v683
    %v1067 = vunpack.c.l.b16 %v684
    %v1068 = vunpack.c.h.b16 %v684
    %v1069 = vunpack.c.l.b16 %v685
    %v1070 = vunpack.c.h.b16 %v685
    %v1071 = vunpack.c.l.b16 %v686
    %v1072 = vunpack.c.h.b16 %v686
    %v1073 = vunpack.c.l.b16 %v687
    %v1074 = vunpack.c.h.b16 %v687
    %v1075 = vunpack.c.l.b16 %v688
    %v1076 = vunpack.c.h.b16 %v688
    %v1077 = vunpack.c.l.b16 %v689
    %v1078 = vunpack.c.h.b16 %v689
    %v1079 = vunpack.c.l.b16 %v690
    %v1080 = vunpack.c.h.b16 %v690
    %v1081 = vunpack.c.l.b16 %v691
    %v1082 = vunpack.c.h.b16 %v691
    %v1083 = vunpack.c.l.b16 %v692
    %v1084 = vunpack.c.h.b16 %v692
    %v1085 = vunpack.c.l.b16 %v693
    %v1086 = vunpack.c.h.b16 %v693
    %v1087 = vunpack.c.l.b16 %v694
    %v1088 = vunpack.c.h.b16 %v694
    %v1089 = vunpack.c.l.b16 %v695
    %v1090 = vunpack.c.h.b16 %v695
    %v1091 = vunpack.c.l.b16 %v696
    %v1092 = vunpack.c.h.b16 %v696
    %v1093 = vunpack.c.l.b16 %v697
    %v1094 = vunpack.c.h.b16 %v697
    %v1095 = vunpack.c.l.b16 %v698
    %v1096 = vunpack.c.h.b16 %v698
    %v1097 = vunpack.c.l.b16 %v699
    %v1098 = vunpack.c.h.b16 %v699
    %v1099 = vunpack.c.l.b16 %v700
    %v1100 = vunpack.c.h.b16 %v700
    %v1101 = vunpack.c.l.b16 %v701
    %v1102 = vunpack.c.h.b16 %v701
    %v1103 = vunpack.c.l.b16 %v702
    %v1104 = vunpack.c.h.b16 %v702
    %v1105 = vunpack.c.l.b16 %v703
    %v1106 = vunpack.c.h.b16 %v703
    %v1107 = vunpack.c.l.b16 %v704
    %v1108 = vunpack.c.h.b16 %v704
    %v1109 = vunpack.c.l.b16 %v705
    %v1110 = vunpack.c.h.b16 %v705
    %v1111 = vunpack.c.l.b16 %v706
    %v1112 = vunpack.c.h.b16 %v706
    %v1113 = vpack.c.b16 %v861, %v857
    %v1114 = vpack.c.b16 %v862, %v858
    %v1115 = vpack.c.b16 %v863, %v859
    %v1116 = vpack.c.b16 %v864, %v860
    %v1117 = vpack.c.b16 %v869, %v865
    %v1118 = vpack.c.b16 %v870, %v866
    %v1119 = vpack.c.b16 %v871, %v867
    %v1120 = vpack.c.b16 %v872, %v868
    %v1121 = vpack.c.b16 %v877, %v873
    %v1122 = vpack.c.b16 %v878, %v874
    %v1123 = vpack.c.b16 %v879, %v875
    %v1124 = vpack.c.b16 %v880, %v876
    %v1125 = vpack.c.b16 %v885, %v881
    %v1126 = vpack.c.b16 %v886, %v882
    %v1127 = vpack.c.b16 %v887, %v883
    %v1128 = vpack.c.b16 %v888, %v884
    %v1129 = vpack.c.b16 %v893, %v889
    %v1130 = vpack.c.b16 %v894, %v890
    %v1131 = vpack.c.b16 %v895, %v891
    %v1132 = vpack.c.b16 %v896, %v892
    %v1133 = vpack.c.b16 %v901, %v897
    %v1134 = vpack.c.b16 %v902, %v898
    %v1135 = vpack.c.b16 %v903, %v899
    %v1136 = vpack.c.b16 %v904, %v900
    %v1137 = vpack.c.b16 %v909, %v905
    %v1138 = vpack.c.b16 %v910, %v906
    %v1139 = vpack.c.b16 %v911, %v907
    %v1140 = vpack.c.b16 %v912, %v908
    %v1141 = vpack.c.b16 %v917, %v913
    %v1142 = vpack.c.b16 %v918, %v914
    %v1143 = vpack.c.b16 %v919, %v915
    %v1144 = vpack.c.b16 %v920, %v916
    %v1145 = vpack.c.b16 %v925, %v921
    %v1146 = vpack.c.b16 %v926, %v922
    %v1147 = vpack.c.b16 %v927, %v923
    %v1148 = vpack.c.b16 %v928, %v924
    %v1149 = vpack.c.b16 %v933, %v929
    %v1150 = vpack.c.b16 %v934, %v930
    %v1151 = vpack.c.b16 %v935, %v931
    %v1152 = vpack.c.b16 %v936, %v932
    %v1153 = vpack.c.b16 %v941, %v937
    %v1154 = vpack.c.b16 %v942, %v938
    %v1155 = vpack.c.b16 %v943, %v939
    %v1156 = vpack.c.b16 %v944, %v940
    %v1157 = vpack.c.b16 %v949, %v945
    %v1158 = vpack.c.b16 %v950, %v946
    %v1159 = vpack.c.b16 %v951, %v947
    %v1160 = vpack.c.b16 %v952, %v948
    %v1161 = vpack.c.b16 %v957, %v953
    %v1162 = vpack.c.b16 %v958, %v954
    %v1163 = vpack.c.b16 %v959, %v955
    %v1164 = vpack.c.b16 %v960, %v956
    %v1165 = vpack.c.b16 %v965, %v961
    %v1166 = vpack.c.b16 %v966, %v962
    %v1167 = vpack.c.b16 %v967, %v963
    %v1168 = vpack.c.b16 %v968, %v964
    %v1169 = vpack.c.b16 %v973, %v969
    %v1170 = vpack.c.b16 %v974, %v970
    %v1171 = vpack.c.b16 %v975, %v971
    %v1172 = vpack.c.b16 %v976, %v972
    %v1173 = vpack.c.b16 %v981, %v977
    %v1174 = vpack.c.b16 %v982, %v978
    %v1175 = vpack.c.b16 %v983, %v979
    %v1176 = vpack.c.b16 %v984, %v980
    %v1177 = vpack.c.b16 %v989, %v985
    %v1178 = vpack.c.b16 %v990, %v986
    %v1179 = vpack.c.b16 %v991, %v987
    %v1180 = vpack.c.b16 %v992, %v988
    %v1181 = vpack.c.b16 %v997, %v993
    %v1182 = vpack.c.b16 %v998, %v994
    %v1183 = vpack.c.b16 %v999, %v995
    %v1184 = vpack.c.b16 %v1000, %v996
    %v1185 = vpack.c.b16 %v1005, %v1001
    %v1186 = vpack.c.b16 %v1006, %v1002
    %v1187 = vpack.c.b16 %v1007, %v1003
    %v1188 = vpack.c.b16 %v1008, %v1004
    %v1189 = vpack.c.b16 %v1013, %v1009
    %v1190 = vpack.c.b16 %v1014, %v1010
    %v1191 = vpack.c.b16 %v1015, %v1011
    %v1192 = vpack.c.b16 %v1016, %v1012
    %v1193 = vpack.c.b16 %v1021, %v1017
    %v1194 = vpack.c.b16 %v1022, %v1018
    %v1195 = vpack.c.b16 %v1023, %v1019
    %v1196 = vpack.c.b16 %v1024, %v1020
    %v1197 = vpack.c.b16 %v1029, %v1025
    %v1198 = vpack.c.b16 %v1030, %v1026
    %v1199 = vpack.c.b16 %v1031, %v1027
    %v1200 = vpack.c.b16 %v1032, %v1028
    %v1201 = vpack.c.b16 %v1037, %v1033
    %v1202 = vpack.c.b16 %v1038, %v1034
    %v1203 = vpack.c.b16 %v1039, %v1035
    %v1204 = vpack.c.b16 %v1040, %v1036
    %v1205 = vpack.c.b16 %v1045, %v1041
    %v1206 = vpack.c.b16 %v1046, %v1042
    %v1207 = vpack.c.b16 %v1047, %v1043
    %v1208 = vpack.c.b16 %v1048, %v1044
    %v1209 = vpack.c.b16 %v1053, %v1049
    %v1210 = vpack.c.b16 %v1054, %v1050
    %v1211 = vpack.c.b16 %v1055, %v1051
    %v1212 = vpack.c.b16 %v1056, %v1052
    %v1213 = vpack.c.b16 %v1061, %v1057
    %v1214 = vpack.c.b16 %v1062, %v1058
    %v1215 = vpack.c.b16 %v1063, %v1059
    %v1216 = vpack.c.b16 %v1064, %v1060
    %v1217 = vpack.c.b16 %v1069, %v1065
    %v1218 = vpack.c.b16 %v1070, %v1066
    %v1219 = vpack.c.b16 %v1071, %v1067
    %v1220 = vpack.c.b16 %v1072, %v1068
    %v1221 = vpack.c.b16 %v1077, %v1073
    %v1222 = vpack.c.b16 %v1078, %v1074
    %v1223 = vpack.c.b16 %v1079, %v1075
    %v1224 = vpack.c.b16 %v1080, %v1076
    %v1225 = vpack.c.b16 %v1085, %v1081
    %v1226 = vpack.c.b16 %v1086, %v1082
    %v1227 = vpack.c.b16 %v1087, %v1083
    %v1228 = vpack.c.b16 %v1088, %v1084
    %v1229 = vpack.c.b16 %v1093, %v1089
    %v1230 = vpack.c.b16 %v1094, %v1090
    %v1231 = vpack.c.b16 %v1095, %v1091
    %v1232 = vpack.c.b16 %v1096, %v1092
    %v1233 = vpack.c.b16 %v1101, %v1097
    %v1234 = vpack.c.b16 %v1102, %v1098
    %v1235 = vpack.c.b16 %v1103, %v1099
    %v1236 = vpack.c.b16 %v1104, %v1100
    %v1237 = vpack.c.b16 %v1109, %v1105
    %v1238 = vpack.c.b16 %v1110, %v1106
    %v1239 = vpack.c.b16 %v1111, %v1107
    %v1240 = vpack.c.b16 %v1112, %v1108
    %1369 = vmatprep.subr.bf16.mxu0 %v1114
    %1370 = vmatpush1.bf16.msra.mxu0 %v1113
    %1371 = vmatprep.subr.bf16.mxu0 %v1118
    %1372 = vmatpush1.bf16.msra.mxu0 %v1117
    %1373 = vmatprep.subr.bf16.mxu0 %v1122
    %1374 = vmatpush1.bf16.msra.mxu0 %v1121
    %1375 = vmatprep.subr.bf16.mxu0 %v1126
    %1376 = vmatpush1.bf16.msra.mxu0 %v1125
    %1377 = vmatprep.subr.bf16.mxu0 %v1130
    %1378 = vmatpush1.bf16.msra.mxu0 %v1129
    %1379 = vmatprep.subr.bf16.mxu0 %v1134
    %1380 = vmatpush1.bf16.msra.mxu0 %v1133
    %1381 = vmatprep.subr.bf16.mxu0 %v1138
    %1382 = vmatpush1.bf16.msra.mxu0 %v1137
    %1383 = vmatprep.subr.bf16.mxu0 %v1142
    %1384 = vmatpush1.bf16.msra.mxu0 %v1141
    %1385 = vmatprep.subr.bf16.mxu0 %v1146
    %1386 = vmatpush1.bf16.msra.mxu0 %v1145
    %1387 = vmatprep.subr.bf16.mxu0 %v1150
    %1388 = vmatpush1.bf16.msra.mxu0 %v1149
    %1389 = vmatprep.subr.bf16.mxu0 %v1154
    %1390 = vmatpush1.bf16.msra.mxu0 %v1153
    %1391 = vmatprep.subr.bf16.mxu0 %v1158
    %1392 = vmatpush1.bf16.msra.mxu0 %v1157
    %1393 = vmatprep.subr.bf16.mxu0 %v1162
    %1394 = vmatpush1.bf16.msra.mxu0 %v1161
    %1395 = vmatprep.subr.bf16.mxu0 %v1166
    %1396 = vmatpush1.bf16.msra.mxu0 %v1165
    %1397 = vmatprep.subr.bf16.mxu0 %v1170
    %1398 = vmatpush1.bf16.msra.mxu0 %v1169
    %1399 = vmatprep.subr.bf16.mxu0 %v1174
    %1400 = vmatpush1.bf16.msra.mxu0 %v1173
    %1401 = vmatprep.mubr.bf16.mxu0 %v576
    %1402 = vmatmul.mubr.bf16.gmra.mrb[0].mxu0 %v575
    %v1403 = vpop.f32.mrb[0].mxu0
    %v1404 = vadd.f32 %v712, %v1403
    %v1405 = vpop.f32.mrb[0].mxu0
    %v1406 = vadd.f32 %v716, %v1405
    %v1407 = vpop.f32.mrb[0].mxu0
    %v1408 = vadd.f32 %v712, %v1407
    %v1409 = vpop.f32.mrb[0].mxu0
    %v1410 = vadd.f32 %v716, %v1409
    %1411 = vdwg.mxu0
    %1412 = vmatprep.subr.bf16.mxu0 %v1178
    %1413 = vmatpush1.bf16.msra.mxu0 %v1177
    %1414 = vmatprep.subr.bf16.mxu0 %v1182
    %1415 = vmatpush1.bf16.msra.mxu0 %v1181
    %1416 = vmatprep.subr.bf16.mxu0 %v1186
    %1417 = vmatpush1.bf16.msra.mxu0 %v1185
    %1418 = vmatprep.subr.bf16.mxu0 %v1190
    %1419 = vmatpush1.bf16.msra.mxu0 %v1189
    %1420 = vmatprep.subr.bf16.mxu0 %v1194
    %1421 = vmatpush1.bf16.msra.mxu0 %v1193
    %1422 = vmatprep.subr.bf16.mxu0 %v1198
    %1423 = vmatpush1.bf16.msra.mxu0 %v1197
    %1424 = vmatprep.subr.bf16.mxu0 %v1202
    %1425 = vmatpush1.bf16.msra.mxu0 %v1201
    %1426 = vmatprep.subr.bf16.mxu0 %v1206
    %1427 = vmatpush1.bf16.msra.mxu0 %v1205
    %1428 = vmatprep.subr.bf16.mxu0 %v1210
    %1429 = vmatpush1.bf16.msra.mxu0 %v1209
    %1430 = vmatprep.subr.bf16.mxu0 %v1214
    %1431 = vmatpush1.bf16.msra.mxu0 %v1213
    %1432 = vmatprep.subr.bf16.mxu0 %v1218
    %1433 = vmatpush1.bf16.msra.mxu0 %v1217
    %1434 = vmatprep.subr.bf16.mxu0 %v1222
    %1435 = vmatpush1.bf16.msra.mxu0 %v1221
    %1436 = vmatprep.subr.bf16.mxu0 %v1226
    %1437 = vmatpush1.bf16.msra.mxu0 %v1225
    %1438 = vmatprep.subr.bf16.mxu0 %v1230
    %1439 = vmatpush1.bf16.msra.mxu0 %v1229
    %1440 = vmatprep.subr.bf16.mxu0 %v1234
    %1441 = vmatpush1.bf16.msra.mxu0 %v1233
    %1442 = vmatprep.subr.bf16.mxu0 %v1238
    %1443 = vmatpush1.bf16.msra.mxu0 %v1237
    %1444 = vmatprep.mubr.bf16.mxu0 %v578
    %1445 = vmatmul.mubr.bf16.gmra.mrb[0].mxu0 %v577
    %v1446 = vpop.f32.mrb[0].mxu0
    %v1447 = vadd.f32 %v1404, %v1446
    %v1448 = vpop.f32.mrb[0].mxu0
    %v1449 = vadd.f32 %v1406, %v1448
    %v1450 = vpop.f32.mrb[0].mxu0
    %v1451 = vadd.f32 %v1408, %v1450
    %v1452 = vpop.f32.mrb[0].mxu0
    %v1453 = vadd.f32 %v1410, %v1452
    %1454 = vdwg.mxu0
    %1455 = vmatprep.subr.bf16.mxu0 %v1116
    %1456 = vmatpush1.bf16.msra.mxu0 %v1115
    %1457 = vmatprep.subr.bf16.mxu0 %v1120
    %1458 = vmatpush1.bf16.msra.mxu0 %v1119
    %1459 = vmatprep.subr.bf16.mxu0 %v1124
    %1460 = vmatpush1.bf16.msra.mxu0 %v1123
    %1461 = vmatprep.subr.bf16.mxu0 %v1128
    %1462 = vmatpush1.bf16.msra.mxu0 %v1127
    %1463 = vmatprep.subr.bf16.mxu0 %v1132
    %1464 = vmatpush1.bf16.msra.mxu0 %v1131
    %1465 = vmatprep.subr.bf16.mxu0 %v1136
    %1466 = vmatpush1.bf16.msra.mxu0 %v1135
    %1467 = vmatprep.subr.bf16.mxu0 %v1140
    %1468 = vmatpush1.bf16.msra.mxu0 %v1139
    %1469 = vmatprep.subr.bf16.mxu0 %v1144
    %1470 = vmatpush1.bf16.msra.mxu0 %v1143
    %1471 = vmatprep.subr.bf16.mxu0 %v1148
    %1472 = vmatpush1.bf16.msra.mxu0 %v1147
    %1473 = vmatprep.subr.bf16.mxu0 %v1152
    %1474 = vmatpush1.bf16.msra.mxu0 %v1151
    %1475 = vmatprep.subr.bf16.mxu0 %v1156
    %1476 = vmatpush1.bf16.msra.mxu0 %v1155
    %1477 = vmatprep.subr.bf16.mxu0 %v1160
    %1478 = vmatpush1.bf16.msra.mxu0 %v1159
    %1479 = vmatprep.subr.bf16.mxu0 %v1164
    %1480 = vmatpush1.bf16.msra.mxu0 %v1163
    %1481 = vmatprep.subr.bf16.mxu0 %v1168
    %1482 = vmatpush1.bf16.msra.mxu0 %v1167
    %1483 = vmatprep.subr.bf16.mxu0 %v1172
    %1484 = vmatpush1.bf16.msra.mxu0 %v1171
    %1485 = vmatprep.subr.bf16.mxu0 %v1176
    %1486 = vmatpush1.bf16.msra.mxu0 %v1175
    %1487 = vmatprep.mubr.bf16.mxu0 %v576
    %1488 = vmatmul.mubr.bf16.gmra.mrb[0].mxu0 %v575
    %v1489 = vpop.f32.mrb[0].mxu0
    %v1490 = vadd.f32 %v720, %v1489
    %v1491 = vpop.f32.mrb[0].mxu0
    %v1492 = vadd.f32 %v724, %v1491
    %v1493 = vpop.f32.mrb[0].mxu0
    %v1494 = vadd.f32 %v720, %v1493
    %v1495 = vpop.f32.mrb[0].mxu0
    %v1496 = vadd.f32 %v724, %v1495
    %1497 = vdwg.mxu0
    %1498 = vmatprep.subr.bf16.mxu0 %v1180
    %1499 = vmatpush1.bf16.msra.mxu0 %v1179
    %1500 = vmatprep.subr.bf16.mxu0 %v1184
    %1501 = vmatpush1.bf16.msra.mxu0 %v1183
    %1502 = vmatprep.subr.bf16.mxu0 %v1188
    %1503 = vmatpush1.bf16.msra.mxu0 %v1187
    %1504 = vmatprep.subr.bf16.mxu0 %v1192
    %1505 = vmatpush1.bf16.msra.mxu0 %v1191
    %1506 = vmatprep.subr.bf16.mxu0 %v1196
    %1507 = vmatpush1.bf16.msra.mxu0 %v1195
    %1508 = vmatprep.subr.bf16.mxu0 %v1200
    %1509 = vmatpush1.bf16.msra.mxu0 %v1199
    %1510 = vmatprep.subr.bf16.mxu0 %v1204
    %1511 = vmatpush1.bf16.msra.mxu0 %v1203
    %1512 = vmatprep.subr.bf16.mxu0 %v1208
    %1513 = vmatpush1.bf16.msra.mxu0 %v1207
    %1514 = vmatprep.subr.bf16.mxu0 %v1212
    %1515 = vmatpush1.bf16.msra.mxu0 %v1211
    %1516 = vmatprep.subr.bf16.mxu0 %v1216
    %1517 = vmatpush1.bf16.msra.mxu0 %v1215
    %1518 = vmatprep.subr.bf16.mxu0 %v1220
    %1519 = vmatpush1.bf16.msra.mxu0 %v1219
    %1520 = vmatprep.subr.bf16.mxu0 %v1224
    %1521 = vmatpush1.bf16.msra.mxu0 %v1223
    %1522 = vmatprep.subr.bf16.mxu0 %v1228
    %1523 = vmatpush1.bf16.msra.mxu0 %v1227
    %1524 = vmatprep.subr.bf16.mxu0 %v1232
    %1525 = vmatpush1.bf16.msra.mxu0 %v1231
    %1526 = vmatprep.subr.bf16.mxu0 %v1236
    %1527 = vmatpush1.bf16.msra.mxu0 %v1235
    %1528 = vmatprep.subr.bf16.mxu0 %v1240
    %1529 = vmatpush1.bf16.msra.mxu0 %v1239
    %1530 = vmatprep.mubr.bf16.mxu0 %v578
    %1531 = vmatmul.mubr.bf16.gmra.mrb[0].mxu0 %v577
    %v1532 = vpop.f32.mrb[0].mxu0
    %v1533 = vadd.f32 %v1490, %v1532
    %v1534 = vpop.f32.mrb[0].mxu0
    %v1535 = vadd.f32 %v1492, %v1534
    %v1536 = vpop.f32.mrb[0].mxu0
    %v1537 = vadd.f32 %v1494, %v1536
    %v1538 = vpop.f32.mrb[0].mxu0
    %v1539 = vadd.f32 %v1496, %v1538
    %1540 = vdwg.mxu0
    %v1541 = vmax.f32 %v1447, 0.0
    %v1542 = vmax.f32 %v1449, 0.0
    %v1543 = vmax.f32 %v1533, 0.0
    %v1544 = vmax.f32 %v1535, 0.0
    %v1545 = vmax.f32 %v1451, 0.0
    %v1546 = vmax.f32 %v1453, 0.0
    %v1547 = vmax.f32 %v1537, 0.0
    %v1548 = vmax.f32 %v1539, 0.0
    %v1549 = vpack.c.bf16 %v1545, %v1541
    %v1550 = vpack.c.bf16 %v1546, %v1542
    %v1551 = vpack.c.bf16 %v1547, %v1543
    %v1552 = vpack.c.bf16 %v1548, %v1544
    %v1553 = vld [vmem:[#allocation7] sm:$0xf]
    %v1554 = vld [vmem:[#allocation7 + $0x4] sm:$0xf]
    %v1555 = vld [vmem:[#allocation7 + $0x8] sm:$0xf]
    %v1556 = vld [vmem:[#allocation7 + $0xc] sm:$0xf]
    %v1557 = vld [vmem:[#allocation7 + $0x10] sm:$0xf]
    %v1558 = vld [vmem:[#allocation7 + $0x14] sm:$0xf]
    %v1559 = vld [vmem:[#allocation7 + $0x18] sm:$0xf]
    %v1560 = vld [vmem:[#allocation7 + $0x1c] sm:$0xf]
    %v1561 = vld [vmem:[#allocation7 + $0x20] sm:$0xf]
    %v1562 = vld [vmem:[#allocation7 + $0x24] sm:$0xf]
    %v1563 = vld [vmem:[#allocation7 + $0x28] sm:$0xf]
    %v1564 = vld [vmem:[#allocation7 + $0x2c] sm:$0xf]
    %v1565 = vld [vmem:[#allocation7 + $0x30] sm:$0xf]
    %v1566 = vld [vmem:[#allocation7 + $0x34] sm:$0xf]
    %v1567 = vld [vmem:[#allocation7 + $0x38] sm:$0xf]
    %v1568 = vld [vmem:[#allocation7 + $0x3c] sm:$0xf]
    %v1569 = vld [vmem:[#allocation7 + $0x40] sm:$0xf]
    %v1570 = vld [vmem:[#allocation7 + $0x44] sm:$0xf]
    %v1571 = vld [vmem:[#allocation7 + $0x48] sm:$0xf]
    %v1572 = vld [vmem:[#allocation7 + $0x4c] sm:$0xf]
    %v1573 = vld [vmem:[#allocation7 + $0x50] sm:$0xf]
    %v1574 = vld [vmem:[#allocation7 + $0x54] sm:$0xf]
    %v1575 = vld [vmem:[#allocation7 + $0x58] sm:$0xf]
    %v1576 = vld [vmem:[#allocation7 + $0x5c] sm:$0xf]
    %v1577 = vld [vmem:[#allocation7 + $0x60] sm:$0xf]
    %v1578 = vld [vmem:[#allocation7 + $0x64] sm:$0xf]
    %v1579 = vld [vmem:[#allocation7 + $0x68] sm:$0xf]
    %v1580 = vld [vmem:[#allocation7 + $0x6c] sm:$0xf]
    %v1581 = vld [vmem:[#allocation7 + $0x70] sm:$0xf]
    %v1582 = vld [vmem:[#allocation7 + $0x74] sm:$0xf]
    %v1583 = vld [vmem:[#allocation7 + $0x78] sm:$0xf]
    %v1584 = vld [vmem:[#allocation7 + $0x7c] sm:$0xf]
    %v1585 = vld [vmem:[#allocation7 + $0x80] sm:$0xf]
    %v1586 = vld [vmem:[#allocation7 + $0x84] sm:$0xf]
    %v1587 = vld [vmem:[#allocation7 + $0x88] sm:$0xf]
    %v1588 = vld [vmem:[#allocation7 + $0x8c] sm:$0xf]
    %v1589 = vld [vmem:[#allocation7 + $0x90] sm:$0xf]
    %v1590 = vld [vmem:[#allocation7 + $0x94] sm:$0xf]
    %v1591 = vld [vmem:[#allocation7 + $0x98] sm:$0xf]
    %v1592 = vld [vmem:[#allocation7 + $0x9c] sm:$0xf]
    %v1593 = vld [vmem:[#allocation7 + $0xa0] sm:$0xf]
    %v1594 = vld [vmem:[#allocation7 + $0xa4] sm:$0xf]
    %v1595 = vld [vmem:[#allocation7 + $0xa8] sm:$0xf]
    %v1596 = vld [vmem:[#allocation7 + $0xac] sm:$0xf]
    %v1597 = vld [vmem:[#allocation7 + $0xb0] sm:$0xf]
    %v1598 = vld [vmem:[#allocation7 + $0xb4] sm:$0xf]
    %v1599 = vld [vmem:[#allocation7 + $0xb8] sm:$0xf]
    %v1600 = vld [vmem:[#allocation7 + $0xbc] sm:$0xf]
    %v1601 = vld [vmem:[#allocation7 + $0xc0] sm:$0xf]
    %v1602 = vld [vmem:[#allocation7 + $0xc4] sm:$0xf]
    %v1603 = vld [vmem:[#allocation7 + $0xc8] sm:$0xf]
    %v1604 = vld [vmem:[#allocation7 + $0xcc] sm:$0xf]
    %v1605 = vld [vmem:[#allocation7 + $0xd0] sm:$0xf]
    %v1606 = vld [vmem:[#allocation7 + $0xd4] sm:$0xf]
    %v1607 = vld [vmem:[#allocation7 + $0xd8] sm:$0xf]
    %v1608 = vld [vmem:[#allocation7 + $0xdc] sm:$0xf]
    %v1609 = vld [vmem:[#allocation7 + $0xe0] sm:$0xf]
    %v1610 = vld [vmem:[#allocation7 + $0xe4] sm:$0xf]
    %v1611 = vld [vmem:[#allocation7 + $0xe8] sm:$0xf]
    %v1612 = vld [vmem:[#allocation7 + $0xec] sm:$0xf]
    %v1613 = vld [vmem:[#allocation7 + $0xf0] sm:$0xf]
    %v1614 = vld [vmem:[#allocation7 + $0xf4] sm:$0xf]
    %v1615 = vld [vmem:[#allocation7 + $0xf8] sm:$0xf]
    %v1616 = vld [vmem:[#allocation7 + $0xfc] sm:$0xf]
    %v1617 = vld [vmem:[%s6 + $0xa] sm:$0x1]
    %v1619 = vlaneseq
    %v1620 = vshrl.u32 %v1619, 7
    %v1621 = vsub.s32 0, %v1620
    %v1622 = vrot.slane %v1617, %v1621
    %v1688 = vunpack.c.l.b16 %v1553
    %v1689 = vunpack.c.l.b16 %v1554
    %v1690 = vunpack.c.l.b16 %v1555
    %v1691 = vunpack.c.l.b16 %v1556
    %v1692 = vunpack.c.l.b16 %v1557
    %v1693 = vunpack.c.l.b16 %v1558
    %v1694 = vunpack.c.l.b16 %v1559
    %v1695 = vunpack.c.l.b16 %v1560
    %v1696 = vunpack.c.l.b16 %v1561
    %v1697 = vunpack.c.l.b16 %v1562
    %v1698 = vunpack.c.l.b16 %v1563
    %v1699 = vunpack.c.l.b16 %v1564
    %v1700 = vunpack.c.l.b16 %v1565
    %v1701 = vunpack.c.l.b16 %v1566
    %v1702 = vunpack.c.l.b16 %v1567
    %v1703 = vunpack.c.l.b16 %v1568
    %v1704 = vunpack.c.l.b16 %v1569
    %v1705 = vunpack.c.l.b16 %v1570
    %v1706 = vunpack.c.l.b16 %v1571
    %v1707 = vunpack.c.l.b16 %v1572
    %v1708 = vunpack.c.l.b16 %v1573
    %v1709 = vunpack.c.l.b16 %v1574
    %v1710 = vunpack.c.l.b16 %v1575
    %v1711 = vunpack.c.l.b16 %v1576
    %v1712 = vunpack.c.l.b16 %v1577
    %v1713 = vunpack.c.l.b16 %v1578
    %v1714 = vunpack.c.l.b16 %v1579
    %v1715 = vunpack.c.l.b16 %v1580
    %v1716 = vunpack.c.l.b16 %v1581
    %v1717 = vunpack.c.l.b16 %v1582
    %v1718 = vunpack.c.l.b16 %v1583
    %v1719 = vunpack.c.l.b16 %v1584
    %v1720 = vunpack.c.l.b16 %v1585
    %v1721 = vunpack.c.l.b16 %v1586
    %v1722 = vunpack.c.l.b16 %v1587
    %v1723 = vunpack.c.l.b16 %v1588
    %v1724 = vunpack.c.l.b16 %v1589
    %v1725 = vunpack.c.l.b16 %v1590
    %v1726 = vunpack.c.l.b16 %v1591
    %v1727 = vunpack.c.l.b16 %v1592
    %v1728 = vunpack.c.l.b16 %v1593
    %v1729 = vunpack.c.l.b16 %v1594
    %v1730 = vunpack.c.l.b16 %v1595
    %v1731 = vunpack.c.l.b16 %v1596
    %v1732 = vunpack.c.l.b16 %v1597
    %v1733 = vunpack.c.l.b16 %v1598
    %v1734 = vunpack.c.l.b16 %v1599
    %v1735 = vunpack.c.l.b16 %v1600
    %v1736 = vunpack.c.l.b16 %v1601
    %v1737 = vunpack.c.l.b16 %v1602
    %v1738 = vunpack.c.l.b16 %v1603
    %v1739 = vunpack.c.l.b16 %v1604
    %v1740 = vunpack.c.l.b16 %v1605
    %v1741 = vunpack.c.l.b16 %v1606
    %v1742 = vunpack.c.l.b16 %v1607
    %v1743 = vunpack.c.l.b16 %v1608
    %v1744 = vunpack.c.l.b16 %v1609
    %v1745 = vunpack.c.l.b16 %v1610
    %v1746 = vunpack.c.l.b16 %v1611
    %v1747 = vunpack.c.l.b16 %v1612
    %v1748 = vunpack.c.l.b16 %v1613
    %v1749 = vunpack.c.l.b16 %v1614
    %v1750 = vunpack.c.l.b16 %v1615
    %v1751 = vunpack.c.l.b16 %v1616
    %v1752 = vpack.c.b16 %v1689, %v1688
    %v1753 = vpack.c.b16 %v1691, %v1690
    %v1754 = vpack.c.b16 %v1693, %v1692
    %v1755 = vpack.c.b16 %v1695, %v1694
    %v1756 = vpack.c.b16 %v1697, %v1696
    %v1757 = vpack.c.b16 %v1699, %v1698
    %v1758 = vpack.c.b16 %v1701, %v1700
    %v1759 = vpack.c.b16 %v1703, %v1702
    %v1760 = vpack.c.b16 %v1705, %v1704
    %v1761 = vpack.c.b16 %v1707, %v1706
    %v1762 = vpack.c.b16 %v1709, %v1708
    %v1763 = vpack.c.b16 %v1711, %v1710
    %v1764 = vpack.c.b16 %v1713, %v1712
    %v1765 = vpack.c.b16 %v1715, %v1714
    %v1766 = vpack.c.b16 %v1717, %v1716
    %v1767 = vpack.c.b16 %v1719, %v1718
    %v1768 = vpack.c.b16 %v1721, %v1720
    %v1769 = vpack.c.b16 %v1723, %v1722
    %v1770 = vpack.c.b16 %v1725, %v1724
    %v1771 = vpack.c.b16 %v1727, %v1726
    %v1772 = vpack.c.b16 %v1729, %v1728
    %v1773 = vpack.c.b16 %v1731, %v1730
    %v1774 = vpack.c.b16 %v1733, %v1732
    %v1775 = vpack.c.b16 %v1735, %v1734
    %v1776 = vpack.c.b16 %v1737, %v1736
    %v1777 = vpack.c.b16 %v1739, %v1738
    %v1778 = vpack.c.b16 %v1741, %v1740
    %v1779 = vpack.c.b16 %v1743, %v1742
    %v1780 = vpack.c.b16 %v1745, %v1744
    %v1781 = vpack.c.b16 %v1747, %v1746
    %v1782 = vpack.c.b16 %v1749, %v1748
    %v1783 = vpack.c.b16 %v1751, %v1750
    %1816 = vmatprep.subr.bf16.mxu0 0
    %1817 = vmatpush1.bf16.msra.mxu0 %v1752
    %1818 = vmatprep.subr.bf16.mxu0 0
    %1819 = vmatpush1.bf16.msra.mxu0 %v1753
    %1820 = vmatprep.subr.bf16.mxu0 0
    %1821 = vmatpush1.bf16.msra.mxu0 %v1754
    %1822 = vmatprep.subr.bf16.mxu0 0
    %1823 = vmatpush1.bf16.msra.mxu0 %v1755
    %1824 = vmatprep.subr.bf16.mxu0 0
    %1825 = vmatpush1.bf16.msra.mxu0 %v1756
    %1826 = vmatprep.subr.bf16.mxu0 0
    %1827 = vmatpush1.bf16.msra.mxu0 %v1757
    %1828 = vmatprep.subr.bf16.mxu0 0
    %1829 = vmatpush1.bf16.msra.mxu0 %v1758
    %1830 = vmatprep.subr.bf16.mxu0 0
    %1831 = vmatpush1.bf16.msra.mxu0 %v1759
    %1832 = vmatprep.subr.bf16.mxu0 0
    %1833 = vmatpush1.bf16.msra.mxu0 %v1760
    %1834 = vmatprep.subr.bf16.mxu0 0
    %1835 = vmatpush1.bf16.msra.mxu0 %v1761
    %1836 = vmatprep.subr.bf16.mxu0 0
    %1837 = vmatpush1.bf16.msra.mxu0 %v1762
    %1838 = vmatprep.subr.bf16.mxu0 0
    %1839 = vmatpush1.bf16.msra.mxu0 %v1763
    %1840 = vmatprep.subr.bf16.mxu0 0
    %1841 = vmatpush1.bf16.msra.mxu0 %v1764
    %1842 = vmatprep.subr.bf16.mxu0 0
    %1843 = vmatpush1.bf16.msra.mxu0 %v1765
    %1844 = vmatprep.subr.bf16.mxu0 0
    %1845 = vmatpush1.bf16.msra.mxu0 %v1766
    %1846 = vmatprep.subr.bf16.mxu0 0
    %1847 = vmatpush1.bf16.msra.mxu0 %v1767
    %1848 = vmatprep.mubr.bf16.mxu0 %v1550
    %1849 = vmatmul.mubr.bf16.gmra.mrb[0].mxu0 %v1549
    %v1850 = vpop.f32.mrb[0].mxu0
    %v1851 = vadd.f32 %v1622, %v1850
    %v1852 = vpop.f32.mrb[0].mxu0
    %v1853 = vpop.f32.mrb[0].mxu0
    %v1854 = vadd.f32 %v1622, %v1853
    %v1855 = vpop.f32.mrb[0].mxu0
    %1856 = vdwg.mxu0
    %1857 = vmatprep.subr.bf16.mxu0 0
    %1858 = vmatpush1.bf16.msra.mxu0 %v1768
    %1859 = vmatprep.subr.bf16.mxu0 0
    %1860 = vmatpush1.bf16.msra.mxu0 %v1769
    %1861 = vmatprep.subr.bf16.mxu0 0
    %1862 = vmatpush1.bf16.msra.mxu0 %v1770
    %1863 = vmatprep.subr.bf16.mxu0 0
    %1864 = vmatpush1.bf16.msra.mxu0 %v1771
    %1865 = vmatprep.subr.bf16.mxu0 0
    %1866 = vmatpush1.bf16.msra.mxu0 %v1772
    %1867 = vmatprep.subr.bf16.mxu0 0
    %1868 = vmatpush1.bf16.msra.mxu0 %v1773
    %1869 = vmatprep.subr.bf16.mxu0 0
    %1870 = vmatpush1.bf16.msra.mxu0 %v1774
    %1871 = vmatprep.subr.bf16.mxu0 0
    %1872 = vmatpush1.bf16.msra.mxu0 %v1775
    %1873 = vmatprep.subr.bf16.mxu0 0
    %1874 = vmatpush1.bf16.msra.mxu0 %v1776
    %1875 = vmatprep.subr.bf16.mxu0 0
    %1876 = vmatpush1.bf16.msra.mxu0 %v1777
    %1877 = vmatprep.subr.bf16.mxu0 0
    %1878 = vmatpush1.bf16.msra.mxu0 %v1778
    %1879 = vmatprep.subr.bf16.mxu0 0
    %1880 = vmatpush1.bf16.msra.mxu0 %v1779
    %1881 = vmatprep.subr.bf16.mxu0 0
    %1882 = vmatpush1.bf16.msra.mxu0 %v1780
    %1883 = vmatprep.subr.bf16.mxu0 0
    %1884 = vmatpush1.bf16.msra.mxu0 %v1781
    %1885 = vmatprep.subr.bf16.mxu0 0
    %1886 = vmatpush1.bf16.msra.mxu0 %v1782
    %1887 = vmatprep.subr.bf16.mxu0 0
    %1888 = vmatpush1.bf16.msra.mxu0 %v1783
    %1889 = vmatprep.mubr.bf16.mxu0 %v1552
    %1890 = vmatmul.mubr.bf16.gmra.mrb[0].mxu0 %v1551
    %v1891 = vpop.f32.mrb[0].mxu0
    %v1892 = vadd.f32 %v1851, %v1891
    %v1893 = vpop.f32.mrb[0].mxu0
    %v1894 = vpop.f32.mrb[0].mxu0
    %v1895 = vadd.f32 %v1854, %v1894
    %v1896 = vpop.f32.mrb[0].mxu0
    %1897 = vdwg.mxu0
    %1898 = vst [vmem:[%s7] sm:$0xff] %v1892
    %1899 = vst [vmem:[%s7 + $0x8] sm:$0xff] %v1895
    // Predicated region
    $region46: #{deepqn_forward.1} parent=1 // pred_check
      _
    $region47: #{deepqn_forward.1} parent=1 // pred_check_branch
      %1901 = sbr.rel (0) target = $region49
    $region48: #{deepqn_forward.1} parent=1 // pred_region
      _
    $region49: #{deepqn_forward.1} parent=1 // pred_fallthru
      _
    // Predicated region
    $region50: #{deepqn_forward.1} parent=1 // pred_check
      _
    $region51: #{deepqn_forward.1} parent=1 // pred_check_branch
      %1903 = sbr.rel (0) target = $region53
    $region52: #{deepqn_forward.1} parent=1 // pred_region
      _
    $region53: #{deepqn_forward.1} parent=1 // pred_fallthru
      _
    %1904 = vsyncpa [#allocation3], 1
    %1905 = vsyncpa [#allocation5], 1
    %1906 = vsyncpa [#allocation8], 1

</llo_original>
